<compile_context>
chip_gen: v7x
topology: tpu7x:2x2x1
jax: 0.10.0
libtpu: 0.0.40
codegen_flags: <defaults>
</compile_context>

<pallas_src>
import jax
import jax.numpy as jnp
from jax.experimental import pallas as pl
from jax.experimental.pallas import tpu as pltpu

_FPAD = 128  # lane-aligned padding for the tiny raw feature dims


# ------------------------------ fused kernel ------------------------------- #

def make_fused_kernel(compute_dtype):
    cdt = compute_dtype

    def kernel(nodes_ref, edges_ref, glob_ref, acat_ref,
               we1_ref, be1_ref, wn1_ref, bn1_ref, wg1_ref, bg1_ref,
               we2_ref, be2_ref, wn2_ref, bn2_ref, wg2_ref, bg2_ref,
               n_out_ref, e_out_ref, g_out_ref):
        n_nodes = nodes_ref.shape[0]

        def linrelu(x, w_ref, b_ref):
            # one MXU push per layer: K-concatenated weights, f32 accumulation,
            # bias + ReLU epilogue in f32.
            acc = jnp.dot(x.astype(cdt), w_ref[...],
                          preferred_element_type=jnp.float32)
            return jnp.maximum(acc + b_ref[...], 0.0)

        nodes = nodes_ref[...]          # [N, 128]  (padded raw node features)
        a_cat = acat_ref[...]           # [2N, E]   ([A_in; A_out], normalized)

        # ---------------- block 1 (hidden = 256) ----------------
        e1 = linrelu(edges_ref[...], we1_ref, be1_ref)                  # [E, 256]
        # single aggregation matmul for both incoming and outgoing means
        agg1 = jnp.dot(a_cat, e1.astype(cdt),
                       preferred_element_type=jnp.float32)              # [2N, 256]
        x_n1 = jnp.concatenate(
            [agg1[:n_nodes], agg1[n_nodes:], nodes], axis=1)            # [N, 640]
        n1 = linrelu(x_n1, wn1_ref, bn1_ref)                            # [N, 256]
        x_g1 = jnp.concatenate(
            [jnp.mean(n1, axis=0, keepdims=True),
             jnp.mean(e1, axis=0, keepdims=True),
             glob_ref[...]], axis=1)                                    # [1, 640]
        g1 = linrelu(x_g1, wg1_ref, bg1_ref)                            # [1, 256]

        # ---------------- block 2 (hidden = 128) ----------------
        e2 = linrelu(e1, we2_ref, be2_ref)                              # [E, 128]
        agg2 = jnp.dot(a_cat, e2.astype(cdt),
                       preferred_element_type=jnp.float32)              # [2N, 128]
        x_n2 = jnp.concatenate(
            [agg2[:n_nodes], agg2[n_nodes:], n1], axis=1)               # [N, 512]
        n2 = linrelu(x_n2, wn2_ref, bn2_ref)                            # [N, 128]
        x_g2 = jnp.concatenate(
            [jnp.mean(n2, axis=0, keepdims=True),
             jnp.mean(e2, axis=0, keepdims=True),
             g1], axis=1)                                               # [1, 512]
        g2 = linrelu(x_g2, wg2_ref, bg2_ref)                            # [1, 128]

        n_out_ref[...] = n2
        e_out_ref[...] = e2
        g_out_ref[...] = g2

    return kernel


# ------------------------------- JAX glue ----------------------------------- #

def build_agg_matrices(senders, receivers, num_nodes):
    """Dense normalized incidence matrices for 'avg' aggregation.

    A_in[n, e]  = 1/in_deg(n)  if receivers[e] == n else 0
    A_out[n, e] = 1/out_deg(n) if senders[e]  == n else 0
    Nodes with no incident edges get an all-zero row (scatter_mean -> 0).
    """
    node_ids = jnp.arange(num_nodes)
    in_mask = (receivers[None, :] == node_ids[:, None]).astype(jnp.float32)
    out_mask = (senders[None, :] == node_ids[:, None]).astype(jnp.float32)
    in_deg = jnp.maximum(in_mask.sum(axis=1, keepdims=True), 1.0)
    out_deg = jnp.maximum(out_mask.sum(axis=1, keepdims=True), 1.0)
    return in_mask / in_deg, out_mask / out_deg


def _pad_cols(x, to):
    return jnp.pad(x, ((0, 0), (0, to - x.shape[1])))


def _pad_rows(w, to):
    return jnp.pad(w, ((0, to - w.shape[0]), (0, 0)))


def init_params(key, num_node_features, num_edge_features, num_global_features):
    def linear(key, fan_in, fan_out):
        scale = 1.0 / jnp.sqrt(jnp.float32(fan_in))
        return jax.random.normal(key, (fan_in, fan_out), jnp.float32) * scale

    ks = jax.random.split(key, 16)
    p = {}
    # block 1 (hidden = 256)
    p["edge1_w"] = linear(ks[0], num_edge_features, 256)
    p["edge1_b"] = jnp.zeros((1, 256), jnp.float32)
    p["node1_wn"] = linear(ks[1], num_node_features, 256)
    p["node1_win"] = linear(ks[2], 256, 256)
    p["node1_wout"] = linear(ks[3], 256, 256)
    p["node1_b"] = jnp.zeros((1, 256), jnp.float32)
    p["global1_wg"] = linear(ks[4], num_global_features, 256)
    p["global1_wn"] = linear(ks[5], 256, 256)
    p["global1_we"] = linear(ks[6], 256, 256)
    p["global1_b"] = jnp.zeros((1, 256), jnp.float32)
    # block 2 (hidden = 128)
    p["edge2_w"] = linear(ks[7], 256, 128)
    p["edge2_b"] = jnp.zeros((1, 128), jnp.float32)
    p["node2_wn"] = linear(ks[8], 256, 128)
    p["node2_win"] = linear(ks[9], 128, 128)
    p["node2_wout"] = linear(ks[10], 128, 128)
    p["node2_b"] = jnp.zeros((1, 128), jnp.float32)
    p["global2_wg"] = linear(ks[11], 256, 128)
    p["global2_wn"] = linear(ks[12], 128, 128)
    p["global2_we"] = linear(ks[13], 128, 128)
    p["global2_b"] = jnp.zeros((1, 128), jnp.float32)
    return p


def graph_network_forward(params, nodes, edges, globals_, senders, receivers,
                          *, compute_dtype=jnp.float32):
    """GraphNetwork.forward: two stacked (edge, node, global) blocks, each
    linear followed by ReLU, 'avg' aggregation everywhere — one fused Pallas
    kernel launch."""
    num_nodes = nodes.shape[0]
    num_edges = edges.shape[0]
    cdt = compute_dtype

    a_in, a_out = build_agg_matrices(senders, receivers, num_nodes)
    a_cat = jnp.concatenate([a_in, a_out], axis=0).astype(cdt)      # [2N, E]

    # Pad tiny raw feature dims to 128 lanes (zero rows added to weights ->
    # identical math, lane-aligned concat offsets in-kernel).
    nodes_p = _pad_cols(nodes, _FPAD)
    edges_p = _pad_cols(edges, _FPAD)
    glob_p = _pad_cols(globals_, _FPAD)

    # K-concatenated weights, built once at trace time (constant-folded / one
    # tiny XLA op under jit).  Order matches the in-kernel activation concat:
    #   node layer:   [agg_in | agg_out | raw]  ->  [Win; Wout; Wn_pad]
    #   global layer: [mean_n | mean_e | raw]   ->  [Wgn; Wge; Wg_pad]
    we1 = _pad_rows(params["edge1_w"], _FPAD).astype(cdt)
    wn1 = jnp.concatenate([params["node1_win"], params["node1_wout"],
                           _pad_rows(params["node1_wn"], _FPAD)],
                          axis=0).astype(cdt)
    wg1 = jnp.concatenate([params["global1_wn"], params["global1_we"],
                           _pad_rows(params["global1_wg"], _FPAD)],
                          axis=0).astype(cdt)
    we2 = params["edge2_w"].astype(cdt)
    wn2 = jnp.concatenate([params["node2_win"], params["node2_wout"],
                           params["node2_wn"]], axis=0).astype(cdt)
    wg2 = jnp.concatenate([params["global2_wn"], params["global2_we"],
                           params["global2_wg"]], axis=0).astype(cdt)

    vmem = pl.BlockSpec(memory_space=pltpu.MemorySpace.VMEM)
    n2, e2, g2 = pl.pallas_call(
        make_fused_kernel(cdt),
        out_shape=(jax.ShapeDtypeStruct((num_nodes, 128), jnp.float32),
                   jax.ShapeDtypeStruct((num_edges, 128), jnp.float32),
                   jax.ShapeDtypeStruct((1, 128), jnp.float32)),
        in_specs=[vmem] * 16,
        out_specs=(vmem, vmem, vmem),
    )(nodes_p, edges_p, glob_p, a_cat,
      we1, params["edge1_b"], wn1, params["node1_b"], wg1, params["global1_b"],
      we2, params["edge2_b"], wn2, params["node2_b"], wg2, params["global2_b"])
    return n2, e2, g2


# --------------------------- plain-JAX reference ---------------------------- #

def reference_forward(params, nodes, edges, globals_, senders, receivers):
    hp = jax.lax.Precision.HIGHEST
    mm = lambda a, b: jnp.dot(a, b, precision=hp)
    relu = lambda x: jnp.maximum(x, 0.0)
    a_in, a_out = build_agg_matrices(senders, receivers, nodes.shape[0])

    e1 = relu(mm(edges, params["edge1_w"]) + params["edge1_b"])
    n1 = relu(mm(nodes, params["node1_wn"]) + mm(mm(a_in, e1), params["node1_win"])
              + mm(mm(a_out, e1), params["node1_wout"]) + params["node1_b"])
    g1 = relu(mm(globals_, params["global1_wg"])
              + mm(jnp.mean(n1, axis=0, keepdims=True), params["global1_wn"])
              + mm(jnp.mean(e1, axis=0, keepdims=True), params["global1_we"])
              + params["global1_b"])

    e2 = relu(mm(e1, params["edge2_w"]) + params["edge2_b"])
    n2 = relu(mm(n1, params["node2_wn"]) + mm(mm(a_in, e2), params["node2_win"])
              + mm(mm(a_out, e2), params["node2_wout"]) + params["node2_b"])
    g2 = relu(mm(g1, params["global2_wg"])
              + mm(jnp.mean(n2, axis=0, keepdims=True), params["global2_wn"])
              + mm(jnp.mean(e2, axis=0, keepdims=True), params["global2_we"])
              + params["global2_b"])
    return n2, e2, g2


# ----------------------------------- main ----------------------------------- #

if __name__ == "__main__":
    num_node_features = 4
    num_edge_features = 3
    num_global_features = 5
    num_nodes = 8
    num_edges = 16

    key = jax.random.PRNGKey(0)
    k_nodes, k_edges, k_glob, k_send, k_recv, k_params = jax.random.split(key, 6)

    nodes = jax.random.normal(k_nodes, (num_nodes, num_node_features), jnp.float32)
    edges = jax.random.normal(k_edges, (num_edges, num_edge_features), jnp.float32)
    globals_ = jax.random.normal(k_glob, (1, num_global_features), jnp.float32)
    senders = jax.random.randint(k_send, (num_edges,), 0, num_nodes)
    receivers = jax.random.randint(k_recv, (num_edges,), 0, num_nodes)

    params = init_params(k_params, num_node_features, num_edge_features,
                         num_global_features)

    fwd = jax.jit(graph_network_forward)
    n_out, e_out, g_out = fwd(params, nodes, edges, globals_, senders, receivers)
    jax.block_until_ready((n_out, e_out, g_out))

    assert n_out.shape == (num_nodes, 128)
    assert e_out.shape == (num_edges, 128)
    assert g_out.shape == (1, 128)

    # correctness check against a pure-JAX reference of the same forward
    n_ref, e_ref, g_ref = reference_forward(params, nodes, edges, globals_,
                                            senders, receivers)
    max_err = max(float(jnp.max(jnp.abs(n_out - n_ref))),
                  float(jnp.max(jnp.abs(e_out - e_ref))),
                  float(jnp.max(jnp.abs(g_out - g_ref))))
    assert max_err < 1e-2, f"mismatch vs reference: {max_err}"

    print("KERNEL_OK")
</pallas_src>

<mosaic_0001>
module attributes {stable_mosaic.version = 11 : i64} {
  func.func @kernel(%arg0: memref<8x128xf32, #tpu.memory_space<vmem>>, %arg1: memref<16x128xf32, #tpu.memory_space<vmem>>, %arg2: memref<1x128xf32, #tpu.memory_space<vmem>>, %arg3: memref<16x16xf32, #tpu.memory_space<vmem>>, %arg4: memref<128x256xf32, #tpu.memory_space<vmem>>, %arg5: memref<1x256xf32, #tpu.memory_space<vmem>>, %arg6: memref<640x256xf32, #tpu.memory_space<vmem>>, %arg7: memref<1x256xf32, #tpu.memory_space<vmem>>, %arg8: memref<640x256xf32, #tpu.memory_space<vmem>>, %arg9: memref<1x256xf32, #tpu.memory_space<vmem>>, %arg10: memref<256x128xf32, #tpu.memory_space<vmem>>, %arg11: memref<1x128xf32, #tpu.memory_space<vmem>>, %arg12: memref<512x128xf32, #tpu.memory_space<vmem>>, %arg13: memref<1x128xf32, #tpu.memory_space<vmem>>, %arg14: memref<512x128xf32, #tpu.memory_space<vmem>>, %arg15: memref<1x128xf32, #tpu.memory_space<vmem>>, %arg16: memref<8x128xf32, #tpu.memory_space<vmem>>, %arg17: memref<16x128xf32, #tpu.memory_space<vmem>>, %arg18: memref<1x128xf32, #tpu.memory_space<vmem>>) attributes {dimension_semantics = [], scalar_prefetch = 0 : i64, scratch_operands = 0 : i64, tpu.core_type = #tpu.core_type<tc>} {
    %c0 = arith.constant 0 : index
    %c0_0 = arith.constant 0 : index
    %0 = vector.load %arg0[%c0, %c0_0] : memref<8x128xf32, #tpu.memory_space<vmem>>, vector<8x128xf32>
    %c0_1 = arith.constant 0 : index
    %c0_2 = arith.constant 0 : index
    %1 = vector.load %arg3[%c0_1, %c0_2] : memref<16x16xf32, #tpu.memory_space<vmem>>, vector<16x16xf32>
    %c0_3 = arith.constant 0 : index
    %c0_4 = arith.constant 0 : index
    %2 = vector.load %arg1[%c0_3, %c0_4] : memref<16x128xf32, #tpu.memory_space<vmem>>, vector<16x128xf32>
    %c0_5 = arith.constant 0 : index
    %c0_6 = arith.constant 0 : index
    %3 = vector.load %arg4[%c0_5, %c0_6] : memref<128x256xf32, #tpu.memory_space<vmem>>, vector<128x256xf32>
    %cst = arith.constant dense<0.000000e+00> : vector<16x256xf32>
    %4 = tpu.matmul %2, %3, %cst {dimension_numbers = #tpu.dot_dimension_numbers<[1], [0], [0], [1], [0, 0, 1, 1], [], []>} : vector<16x128xf32>, vector<128x256xf32>, vector<16x256xf32> -> vector<16x256xf32>
    %c0_7 = arith.constant 0 : index
    %c0_8 = arith.constant 0 : index
    %5 = vector.load %arg5[%c0_7, %c0_8] : memref<1x256xf32, #tpu.memory_space<vmem>>, vector<1x256xf32>
    %6 = vector.broadcast %5 : vector<1x256xf32> to vector<16x256xf32>
    %7 = arith.addf %4, %6 : vector<16x256xf32>
    %cst_9 = arith.constant 0.000000e+00 : f32
    %8 = vector.broadcast %cst_9 : f32 to vector<16x256xf32>
    %9 = arith.maximumf %7, %8 : vector<16x256xf32>
    %cst_10 = arith.constant dense<0.000000e+00> : vector<16x256xf32>
    %10 = tpu.matmul %1, %9, %cst_10 {dimension_numbers = #tpu.dot_dimension_numbers<[1], [0], [0], [1], [0, 0, 1, 1], [], []>} : vector<16x16xf32>, vector<16x256xf32>, vector<16x256xf32> -> vector<16x256xf32>
    %11 = vector.extract_strided_slice %10 {offsets = [0, 0], sizes = [8, 256], strides = [1, 1]} : vector<16x256xf32> to vector<8x256xf32>
    %12 = vector.extract_strided_slice %10 {offsets = [8, 0], sizes = [8, 256], strides = [1, 1]} : vector<16x256xf32> to vector<8x256xf32>
    %13 = tpu.concatenate %11, %12, %0 in 1 : vector<8x256xf32>, vector<8x256xf32>, vector<8x128xf32> -> vector<8x640xf32>
    %c0_11 = arith.constant 0 : index
    %c0_12 = arith.constant 0 : index
    %14 = vector.load %arg6[%c0_11, %c0_12] : memref<640x256xf32, #tpu.memory_space<vmem>>, vector<640x256xf32>
    %cst_13 = arith.constant dense<0.000000e+00> : vector<8x256xf32>
    %15 = tpu.matmul %13, %14, %cst_13 {dimension_numbers = #tpu.dot_dimension_numbers<[1], [0], [0], [1], [0, 0, 1, 1], [], []>} : vector<8x640xf32>, vector<640x256xf32>, vector<8x256xf32> -> vector<8x256xf32>
    %c0_14 = arith.constant 0 : index
    %c0_15 = arith.constant 0 : index
    %16 = vector.load %arg7[%c0_14, %c0_15] : memref<1x256xf32, #tpu.memory_space<vmem>>, vector<1x256xf32>
    %17 = vector.broadcast %16 : vector<1x256xf32> to vector<8x256xf32>
    %18 = arith.addf %15, %17 : vector<8x256xf32>
    %cst_16 = arith.constant 0.000000e+00 : f32
    %19 = vector.broadcast %cst_16 : f32 to vector<8x256xf32>
    %20 = arith.maximumf %18, %19 : vector<8x256xf32>
    %cst_17 = arith.constant dense<0.000000e+00> : vector<256xf32>
    %21 = vector.multi_reduction <add>, %20, %cst_17 [0] : vector<8x256xf32> to vector<256xf32>
    %22 = vector.shape_cast %21 : vector<256xf32> to vector<1x256xf32>
    %cst_18 = arith.constant 8.000000e+00 : f32
    %23 = vector.broadcast %cst_18 : f32 to vector<1x256xf32>
    %24 = arith.divf %22, %23 : vector<1x256xf32>
    %cst_19 = arith.constant dense<0.000000e+00> : vector<256xf32>
    %25 = vector.multi_reduction <add>, %9, %cst_19 [0] : vector<16x256xf32> to vector<256xf32>
    %26 = vector.shape_cast %25 : vector<256xf32> to vector<1x256xf32>
    %cst_20 = arith.constant 1.600000e+01 : f32
    %27 = vector.broadcast %cst_20 : f32 to vector<1x256xf32>
    %28 = arith.divf %26, %27 : vector<1x256xf32>
    %c0_21 = arith.constant 0 : index
    %c0_22 = arith.constant 0 : index
    %29 = vector.load %arg2[%c0_21, %c0_22] : memref<1x128xf32, #tpu.memory_space<vmem>>, vector<1x128xf32>
    %30 = tpu.concatenate %24, %28, %29 in 1 : vector<1x256xf32>, vector<1x256xf32>, vector<1x128xf32> -> vector<1x640xf32>
    %c0_23 = arith.constant 0 : index
    %c0_24 = arith.constant 0 : index
    %31 = vector.load %arg8[%c0_23, %c0_24] : memref<640x256xf32, #tpu.memory_space<vmem>>, vector<640x256xf32>
    %cst_25 = arith.constant dense<0.000000e+00> : vector<1x256xf32>
    %32 = tpu.matmul %30, %31, %cst_25 {dimension_numbers = #tpu.dot_dimension_numbers<[1], [0], [0], [1], [0, 0, 1, 1], [], []>} : vector<1x640xf32>, vector<640x256xf32>, vector<1x256xf32> -> vector<1x256xf32>
    %c0_26 = arith.constant 0 : index
    %c0_27 = arith.constant 0 : index
    %33 = vector.load %arg9[%c0_26, %c0_27] : memref<1x256xf32, #tpu.memory_space<vmem>>, vector<1x256xf32>
    %34 = arith.addf %32, %33 : vector<1x256xf32>
    %cst_28 = arith.constant 0.000000e+00 : f32
    %35 = vector.broadcast %cst_28 : f32 to vector<1x256xf32>
    %36 = arith.maximumf %34, %35 : vector<1x256xf32>
    %c0_29 = arith.constant 0 : index
    %c0_30 = arith.constant 0 : index
    %37 = vector.load %arg10[%c0_29, %c0_30] : memref<256x128xf32, #tpu.memory_space<vmem>>, vector<256x128xf32>
    %cst_31 = arith.constant dense<0.000000e+00> : vector<16x128xf32>
    %38 = tpu.matmul %9, %37, %cst_31 {dimension_numbers = #tpu.dot_dimension_numbers<[1], [0], [0], [1], [0, 0, 1, 1], [], []>} : vector<16x256xf32>, vector<256x128xf32>, vector<16x128xf32> -> vector<16x128xf32>
    %c0_32 = arith.constant 0 : index
    %c0_33 = arith.constant 0 : index
    %39 = vector.load %arg11[%c0_32, %c0_33] : memref<1x128xf32, #tpu.memory_space<vmem>>, vector<1x128xf32>
    %40 = vector.broadcast %39 : vector<1x128xf32> to vector<16x128xf32>
    %41 = arith.addf %38, %40 : vector<16x128xf32>
    %cst_34 = arith.constant 0.000000e+00 : f32
    %42 = vector.broadcast %cst_34 : f32 to vector<16x128xf32>
    %43 = arith.maximumf %41, %42 : vector<16x128xf32>
    %cst_35 = arith.constant dense<0.000000e+00> : vector<16x128xf32>
    %44 = tpu.matmul %1, %43, %cst_35 {dimension_numbers = #tpu.dot_dimension_numbers<[1], [0], [0], [1], [0, 0, 1, 1], [], []>} : vector<16x16xf32>, vector<16x128xf32>, vector<16x128xf32> -> vector<16x128xf32>
    %45 = vector.extract_strided_slice %44 {offsets = [0, 0], sizes = [8, 128], strides = [1, 1]} : vector<16x128xf32> to vector<8x128xf32>
    %46 = vector.extract_strided_slice %44 {offsets = [8, 0], sizes = [8, 128], strides = [1, 1]} : vector<16x128xf32> to vector<8x128xf32>
    %47 = tpu.concatenate %45, %46, %20 in 1 : vector<8x128xf32>, vector<8x128xf32>, vector<8x256xf32> -> vector<8x512xf32>
    %c0_36 = arith.constant 0 : index
    %c0_37 = arith.constant 0 : index
    %48 = vector.load %arg12[%c0_36, %c0_37] : memref<512x128xf32, #tpu.memory_space<vmem>>, vector<512x128xf32>
    %cst_38 = arith.constant dense<0.000000e+00> : vector<8x128xf32>
    %49 = tpu.matmul %47, %48, %cst_38 {dimension_numbers = #tpu.dot_dimension_numbers<[1], [0], [0], [1], [0, 0, 1, 1], [], []>} : vector<8x512xf32>, vector<512x128xf32>, vector<8x128xf32> -> vector<8x128xf32>
    %c0_39 = arith.constant 0 : index
    %c0_40 = arith.constant 0 : index
    %50 = vector.load %arg13[%c0_39, %c0_40] : memref<1x128xf32, #tpu.memory_space<vmem>>, vector<1x128xf32>
    %51 = vector.broadcast %50 : vector<1x128xf32> to vector<8x128xf32>
    %52 = arith.addf %49, %51 : vector<8x128xf32>
    %cst_41 = arith.constant 0.000000e+00 : f32
    %53 = vector.broadcast %cst_41 : f32 to vector<8x128xf32>
    %54 = arith.maximumf %52, %53 : vector<8x128xf32>
    %cst_42 = arith.constant dense<0.000000e+00> : vector<128xf32>
    %55 = vector.multi_reduction <add>, %54, %cst_42 [0] : vector<8x128xf32> to vector<128xf32>
    %56 = vector.shape_cast %55 : vector<128xf32> to vector<1x128xf32>
    %cst_43 = arith.constant 8.000000e+00 : f32
    %57 = vector.broadcast %cst_43 : f32 to vector<1x128xf32>
    %58 = arith.divf %56, %57 : vector<1x128xf32>
    %cst_44 = arith.constant dense<0.000000e+00> : vector<128xf32>
    %59 = vector.multi_reduction <add>, %43, %cst_44 [0] : vector<16x128xf32> to vector<128xf32>
    %60 = vector.shape_cast %59 : vector<128xf32> to vector<1x128xf32>
    %cst_45 = arith.constant 1.600000e+01 : f32
    %61 = vector.broadcast %cst_45 : f32 to vector<1x128xf32>
    %62 = arith.divf %60, %61 : vector<1x128xf32>
    %63 = tpu.concatenate %58, %62, %36 in 1 : vector<1x128xf32>, vector<1x128xf32>, vector<1x256xf32> -> vector<1x512xf32>
    %c0_46 = arith.constant 0 : index
    %c0_47 = arith.constant 0 : index
    %64 = vector.load %arg14[%c0_46, %c0_47] : memref<512x128xf32, #tpu.memory_space<vmem>>, vector<512x128xf32>
    %cst_48 = arith.constant dense<0.000000e+00> : vector<1x128xf32>
    %65 = tpu.matmul %63, %64, %cst_48 {dimension_numbers = #tpu.dot_dimension_numbers<[1], [0], [0], [1], [0, 0, 1, 1], [], []>} : vector<1x512xf32>, vector<512x128xf32>, vector<1x128xf32> -> vector<1x128xf32>
    %c0_49 = arith.constant 0 : index
    %c0_50 = arith.constant 0 : index
    %66 = vector.load %arg15[%c0_49, %c0_50] : memref<1x128xf32, #tpu.memory_space<vmem>>, vector<1x128xf32>
    %67 = arith.addf %65, %66 : vector<1x128xf32>
    %cst_51 = arith.constant 0.000000e+00 : f32
    %68 = vector.broadcast %cst_51 : f32 to vector<1x128xf32>
    %69 = arith.maximumf %67, %68 : vector<1x128xf32>
    %c0_52 = arith.constant 0 : index
    %c0_53 = arith.constant 0 : index
    %70 = vector.load %arg16[%c0_52, %c0_53] : memref<8x128xf32, #tpu.memory_space<vmem>>, vector<8x128xf32>
    tpu.vector_store %arg16[%c0_52, %c0_53], %54 {strides = array<i32>} : memref<8x128xf32, #tpu.memory_space<vmem>>, vector<8x128xf32>,
    %c0_54 = arith.constant 0 : index
    %c0_55 = arith.constant 0 : index
    %71 = vector.load %arg17[%c0_54, %c0_55] : memref<16x128xf32, #tpu.memory_space<vmem>>, vector<16x128xf32>
    tpu.vector_store %arg17[%c0_54, %c0_55], %43 {strides = array<i32>} : memref<16x128xf32, #tpu.memory_space<vmem>>, vector<16x128xf32>,
    %c0_56 = arith.constant 0 : index
    %c0_57 = arith.constant 0 : index
    %72 = vector.load %arg18[%c0_56, %c0_57] : memref<1x128xf32, #tpu.memory_space<vmem>>, vector<1x128xf32>
    tpu.vector_store %arg18[%c0_56, %c0_57], %69 {strides = array<i32>} : memref<1x128xf32, #tpu.memory_space<vmem>>, vector<1x128xf32>,
    return
  }
}

</mosaic_0001>

<llo_original>
// kernel: graph_network_forward.1
$region0: #{graph_network_forward.1}
  #allocation0 [shape = 'u32[]', space=smem, size = 0x4, offset = 0x4, fixed_abs, tag = 'smem constant byte address 0x4 - core index']
  #allocation1 [shape = 'u32[144,128]{1,0:T(1,128)}', space=vmem, size = 0x12000, scoped, tag = 'internal scratch']
  %s0 = inlined_call_operand.vmem [shape: f32[8,128], index: 0, kind: input, shape index: {}]
  %s1 = inlined_call_operand.vmem [shape: f32[16,128], index: 1, kind: input, shape index: {}]
  %s2 = inlined_call_operand.vmem [shape: f32[1,128], index: 2, kind: input, shape index: {}]
  %s3 = inlined_call_operand.vmem [shape: f32[16,16], index: 3, kind: input, shape index: {}]
  %s4 = inlined_call_operand.vmem [shape: f32[128,256], index: 4, kind: input, shape index: {}]
  %s5 = inlined_call_operand.vmem [shape: f32[1,256], index: 5, kind: input, shape index: {}]
  %s6 = inlined_call_operand.vmem [shape: f32[640,256], index: 6, kind: input, shape index: {}]
  %s7 = inlined_call_operand.vmem [shape: f32[1,256], index: 7, kind: input, shape index: {}]
  %s8 = inlined_call_operand.vmem [shape: f32[640,256], index: 8, kind: input, shape index: {}]
  %s9 = inlined_call_operand.vmem [shape: f32[1,256], index: 9, kind: input, shape index: {}]
  %s10 = inlined_call_operand.vmem [shape: f32[256,128], index: 10, kind: input, shape index: {}]
  %s11 = inlined_call_operand.vmem [shape: f32[1,128], index: 11, kind: input, shape index: {}]
  %s12 = inlined_call_operand.vmem [shape: f32[512,128], index: 12, kind: input, shape index: {}]
  %s13 = inlined_call_operand.vmem [shape: f32[1,128], index: 13, kind: input, shape index: {}]
  %s14 = inlined_call_operand.vmem [shape: f32[512,128], index: 14, kind: input, shape index: {}]
  %s15 = inlined_call_operand.vmem [shape: f32[1,128], index: 15, kind: input, shape index: {}]
  %s16 = inlined_call_operand.hbm [shape: f32[8,128], index: 16, kind: output, shape index: {0}]
  %s17 = inlined_call_operand.hbm [shape: f32[16,128], index: 17, kind: output, shape index: {1}]
  %s18 = inlined_call_operand.hbm [shape: f32[1,128], index: 18, kind: output, shape index: {2}]
  %19 = xla_tuple %s16, %s17, %s18
  %s20 = sld [smem:[#allocation0]]
  $region90: #{graph_network_forward.1} parent=0
    _
  %s22 = ssub.s32 1, %s20
  %s23 = scalar_select 0, %s22, %s20
  $region1: #{graph_network_forward.1} parent=0
    #allocation2 [shape = 'u8[4096]{0}', space=vmem, size = 0x1000, scoped, tag = 'output window, operand 0, single buffered']
    #allocation3 [shape = 's32[1]{0}', space=sflag, size = 0x4, scoped, tag = 'scoped memory for graph_network_forward.1']
    #allocation4 [shape = 'u8[8192]{0}', space=vmem, size = 0x2000, scoped, tag = 'output window, operand 1, single buffered']
    #allocation5 [shape = 's32[1]{0}', space=sflag, size = 0x4, scoped, tag = 'scoped memory for graph_network_forward.1']
    #allocation6 [shape = 'u8[512]{0}', space=vmem, size = 0x400, scoped, tag = 'output window, operand 2, single buffered']
    %24 = vsyncpa [#allocation3], 0
    %25 = vsyncpa [#allocation5], 0
    // Predicated region
    $region2: #{graph_network_forward.1} parent=1 // pred_check
      _
    $region3: #{graph_network_forward.1} parent=1 // pred_check_branch
      %27 = sbr.rel (0) target = $region5
    $region4: #{graph_network_forward.1} parent=1 // pred_region
      _
    $region5: #{graph_network_forward.1} parent=1 // pred_fallthru
      _
    // Predicated region
    $region6: #{graph_network_forward.1} parent=1 // pred_check
      _
    $region7: #{graph_network_forward.1} parent=1 // pred_check_branch
      %29 = sbr.rel (0) target = $region9
    $region8: #{graph_network_forward.1} parent=1 // pred_region
      _
    $region9: #{graph_network_forward.1} parent=1 // pred_fallthru
      _
    // Predicated region
    $region10: #{graph_network_forward.1} parent=1 // pred_check
      _
    $region11: #{graph_network_forward.1} parent=1 // pred_check_branch
      %31 = sbr.rel (0) target = $region13
    $region12: #{graph_network_forward.1} parent=1 // pred_region
      _
    $region13: #{graph_network_forward.1} parent=1 // pred_fallthru
      _
    // Predicated region
    $region14: #{graph_network_forward.1} parent=1 // pred_check
      _
    $region15: #{graph_network_forward.1} parent=1 // pred_check_branch
      %33 = sbr.rel (0) target = $region17
    $region16: #{graph_network_forward.1} parent=1 // pred_region
      _
    $region17: #{graph_network_forward.1} parent=1 // pred_fallthru
      _
    // Predicated region
    $region18: #{graph_network_forward.1} parent=1 // pred_check
      _
    $region19: #{graph_network_forward.1} parent=1 // pred_check_branch
      %35 = sbr.rel (0) target = $region21
    $region20: #{graph_network_forward.1} parent=1 // pred_region
      _
    $region21: #{graph_network_forward.1} parent=1 // pred_fallthru
      _
    // Predicated region
    $region22: #{graph_network_forward.1} parent=1 // pred_check
      _
    $region23: #{graph_network_forward.1} parent=1 // pred_check_branch
      %37 = sbr.rel (0) target = $region25
    $region24: #{graph_network_forward.1} parent=1 // pred_region
      _
    $region25: #{graph_network_forward.1} parent=1 // pred_fallthru
      _
    // Predicated region
    $region26: #{graph_network_forward.1} parent=1 // pred_check
      _
    $region27: #{graph_network_forward.1} parent=1 // pred_check_branch
      %39 = sbr.rel (0) target = $region29
    $region28: #{graph_network_forward.1} parent=1 // pred_region
      _
    $region29: #{graph_network_forward.1} parent=1 // pred_fallthru
      _
    // Predicated region
    $region30: #{graph_network_forward.1} parent=1 // pred_check
      _
    $region31: #{graph_network_forward.1} parent=1 // pred_check_branch
      %41 = sbr.rel (0) target = $region33
    $region32: #{graph_network_forward.1} parent=1 // pred_region
      _
    $region33: #{graph_network_forward.1} parent=1 // pred_fallthru
      _
    // Predicated region
    $region34: #{graph_network_forward.1} parent=1 // pred_check
      _
    $region35: #{graph_network_forward.1} parent=1 // pred_check_branch
      %43 = sbr.rel (0) target = $region37
    $region36: #{graph_network_forward.1} parent=1 // pred_region
      _
    $region37: #{graph_network_forward.1} parent=1 // pred_fallthru
      _
    // Predicated region
    $region38: #{graph_network_forward.1} parent=1 // pred_check
      _
    $region39: #{graph_network_forward.1} parent=1 // pred_check_branch
      %45 = sbr.rel (0) target = $region41
    $region40: #{graph_network_forward.1} parent=1 // pred_region
      _
    $region41: #{graph_network_forward.1} parent=1 // pred_fallthru
      _
    // Predicated region
    $region42: #{graph_network_forward.1} parent=1 // pred_check
      _
    $region43: #{graph_network_forward.1} parent=1 // pred_check_branch
      %47 = sbr.rel (0) target = $region45
    $region44: #{graph_network_forward.1} parent=1 // pred_region
      _
    $region45: #{graph_network_forward.1} parent=1 // pred_fallthru
      _
    // Predicated region
    $region46: #{graph_network_forward.1} parent=1 // pred_check
      _
    $region47: #{graph_network_forward.1} parent=1 // pred_check_branch
      %49 = sbr.rel (0) target = $region49
    $region48: #{graph_network_forward.1} parent=1 // pred_region
      _
    $region49: #{graph_network_forward.1} parent=1 // pred_fallthru
      _
    // Predicated region
    $region50: #{graph_network_forward.1} parent=1 // pred_check
      _
    $region51: #{graph_network_forward.1} parent=1 // pred_check_branch
      %51 = sbr.rel (0) target = $region53
    $region52: #{graph_network_forward.1} parent=1 // pred_region
      _
    $region53: #{graph_network_forward.1} parent=1 // pred_fallthru
      _
    // Predicated region
    $region54: #{graph_network_forward.1} parent=1 // pred_check
      _
    $region55: #{graph_network_forward.1} parent=1 // pred_check_branch
      %53 = sbr.rel (0) target = $region57
    $region56: #{graph_network_forward.1} parent=1 // pred_region
      _
    $region57: #{graph_network_forward.1} parent=1 // pred_fallthru
      _
    // Predicated region
    $region58: #{graph_network_forward.1} parent=1 // pred_check
      _
    $region59: #{graph_network_forward.1} parent=1 // pred_check_branch
      %55 = sbr.rel (0) target = $region61
    $region60: #{graph_network_forward.1} parent=1 // pred_region
      _
    $region61: #{graph_network_forward.1} parent=1 // pred_fallthru
      _
    // Predicated region
    $region62: #{graph_network_forward.1} parent=1 // pred_check
      _
    $region63: #{graph_network_forward.1} parent=1 // pred_check_branch
      %57 = sbr.rel (0) target = $region65
    $region64: #{graph_network_forward.1} parent=1 // pred_region
      _
    $region65: #{graph_network_forward.1} parent=1 // pred_fallthru
      _
    %v58 = vld [vmem:[%s0] sm:$0xff]
    %v59 = vld [vmem:[%s3] sm:$0xff]
    %v60 = vld [vmem:[%s3 + $0x8] sm:$0xff]
    %v61 = vld [vmem:[%s1] sm:$0xff]
    %v62 = vld [vmem:[%s1 + $0x8] sm:$0xff]
    %v63 = vld [vmem:[%s4] sm:$0xff]
    %v64 = vld [vmem:[%s4 + $0x8] sm:$0xff]
    %v65 = vld [vmem:[%s4 + $0x10] sm:$0xff]
    %v66 = vld [vmem:[%s4 + $0x18] sm:$0xff]
    %v67 = vld [vmem:[%s4 + $0x20] sm:$0xff]
    %v68 = vld [vmem:[%s4 + $0x28] sm:$0xff]
    %v69 = vld [vmem:[%s4 + $0x30] sm:$0xff]
    %v70 = vld [vmem:[%s4 + $0x38] sm:$0xff]
    %v71 = vld [vmem:[%s4 + $0x40] sm:$0xff]
    %v72 = vld [vmem:[%s4 + $0x48] sm:$0xff]
    %v73 = vld [vmem:[%s4 + $0x50] sm:$0xff]
    %v74 = vld [vmem:[%s4 + $0x58] sm:$0xff]
    %v75 = vld [vmem:[%s4 + $0x60] sm:$0xff]
    %v76 = vld [vmem:[%s4 + $0x68] sm:$0xff]
    %v77 = vld [vmem:[%s4 + $0x70] sm:$0xff]
    %v78 = vld [vmem:[%s4 + $0x78] sm:$0xff]
    %v79 = vld [vmem:[%s4 + $0x80] sm:$0xff]
    %v80 = vld [vmem:[%s4 + $0x88] sm:$0xff]
    %v81 = vld [vmem:[%s4 + $0x90] sm:$0xff]
    %v82 = vld [vmem:[%s4 + $0x98] sm:$0xff]
    %v83 = vld [vmem:[%s4 + $0xa0] sm:$0xff]
    %v84 = vld [vmem:[%s4 + $0xa8] sm:$0xff]
    %v85 = vld [vmem:[%s4 + $0xb0] sm:$0xff]
    %v86 = vld [vmem:[%s4 + $0xb8] sm:$0xff]
    %v87 = vld [vmem:[%s4 + $0xc0] sm:$0xff]
    %v88 = vld [vmem:[%s4 + $0xc8] sm:$0xff]
    %v89 = vld [vmem:[%s4 + $0xd0] sm:$0xff]
    %v90 = vld [vmem:[%s4 + $0xd8] sm:$0xff]
    %v91 = vld [vmem:[%s4 + $0xe0] sm:$0xff]
    %v92 = vld [vmem:[%s4 + $0xe8] sm:$0xff]
    %v93 = vld [vmem:[%s4 + $0xf0] sm:$0xff]
    %v94 = vld [vmem:[%s4 + $0xf8] sm:$0xff]
    %v95 = vld [vmem:[%s5] sm:$0x3]
    %v97 = vlaneseq
    %v98 = vshrl.u32 %v97, 7
    %v99 = vsub.s32 0, %v98
    %v100 = vrot.slane %v95, %v99
    %v101 = vlaneseq
    %v102 = vshrl.u32 %v101, 7
    %v103 = vsub.s32 1, %v102
    %v104 = vrot.slane %v95, %v103
    %107 = vmatprep.subr.mxu0 %v64
    %108 = vmatpush1.msra.mxu0 %v63
    %109 = vmatprep.subr.mxu0 %v66
    %110 = vmatpush1.msra.mxu0 %v65
    %111 = vmatprep.subr.mxu0 %v68
    %112 = vmatpush1.msra.mxu0 %v67
    %113 = vmatprep.subr.mxu0 %v70
    %114 = vmatpush1.msra.mxu0 %v69
    %115 = vmatprep.subr.mxu0 %v72
    %116 = vmatpush1.msra.mxu0 %v71
    %117 = vmatprep.subr.mxu0 %v74
    %118 = vmatpush1.msra.mxu0 %v73
    %119 = vmatprep.subr.mxu0 %v76
    %120 = vmatpush1.msra.mxu0 %v75
    %121 = vmatprep.subr.mxu0 %v78
    %122 = vmatpush1.msra.mxu0 %v77
    %123 = vmatprep.subr.mxu0 %v80
    %124 = vmatpush1.msra.mxu0 %v79
    %125 = vmatprep.subr.mxu0 %v82
    %126 = vmatpush1.msra.mxu0 %v81
    %127 = vmatprep.subr.mxu0 %v84
    %128 = vmatpush1.msra.mxu0 %v83
    %129 = vmatprep.subr.mxu0 %v86
    %130 = vmatpush1.msra.mxu0 %v85
    %131 = vmatprep.subr.mxu0 %v88
    %132 = vmatpush1.msra.mxu0 %v87
    %133 = vmatprep.subr.mxu0 %v90
    %134 = vmatpush1.msra.mxu0 %v89
    %135 = vmatprep.subr.mxu0 %v92
    %136 = vmatpush1.msra.mxu0 %v91
    %137 = vmatprep.subr.mxu0 %v94
    %138 = vmatpush1.msra.mxu0 %v93
    %139 = vmatprep.subr.mxu0 0.0
    %140 = vmatpush1.msra.mxu0 0.0
    %141 = vmatprep.subr.mxu0 0.0
    %142 = vmatpush1.msra.mxu0 0.0
    %143 = vmatprep.subr.mxu0 0.0
    %144 = vmatpush1.msra.mxu0 0.0
    %145 = vmatprep.subr.mxu0 0.0
    %146 = vmatpush1.msra.mxu0 0.0
    %147 = vmatprep.subr.mxu0 0.0
    %148 = vmatpush1.msra.mxu0 0.0
    %149 = vmatprep.subr.mxu0 0.0
    %150 = vmatpush1.msra.mxu0 0.0
    %151 = vmatprep.subr.mxu0 0.0
    %152 = vmatpush1.msra.mxu0 0.0
    %153 = vmatprep.subr.mxu0 0.0
    %154 = vmatpush1.msra.mxu0 0.0
    %155 = vmatprep.subr.mxu0 0.0
    %156 = vmatpush1.msra.mxu0 0.0
    %157 = vmatprep.subr.mxu0 0.0
    %158 = vmatpush1.msra.mxu0 0.0
    %159 = vmatprep.subr.mxu0 0.0
    %160 = vmatpush1.msra.mxu0 0.0
    %161 = vmatprep.subr.mxu0 0.0
    %162 = vmatpush1.msra.mxu0 0.0
    %163 = vmatprep.subr.mxu0 0.0
    %164 = vmatpush1.msra.mxu0 0.0
    %165 = vmatprep.subr.mxu0 0.0
    %166 = vmatpush1.msra.mxu0 0.0
    %167 = vmatprep.subr.mxu0 0.0
    %168 = vmatpush1.msra.mxu0 0.0
    %169 = vmatprep.subr.mxu0 0.0
    %170 = vmatpush1.msra.mxu0 0.0
    %171 = vmatprep.mubr.f32.mxu0 0.0
    %172 = vmatmul.mubr.f32.gmra.mrb[0].mxu0 %v61
    %v173 = vpop.f32.mrb[0].mxu0
    %v174 = vadd.f32 %v100, %v173
    %v175 = vpop.f32.mrb[0].mxu0
    %v176 = vadd.f32 %v104, %v175
    %177 = vmatprep.mubr.f32.mxu0 0.0
    %178 = vmatmul.mubr.f32.gmra.mrb[0].mxu0 %v62
    %v179 = vpop.f32.mrb[0].mxu0
    %v180 = vadd.f32 %v100, %v179
    %v181 = vpop.f32.mrb[0].mxu0
    %v182 = vadd.f32 %v104, %v181
    %183 = vdwg.mxu0
    %v184 = vmax.f32 %v174, 0.0
    %v185 = vmax.f32 %v176, 0.0
    %v186 = vmax.f32 %v180, 0.0
    %v187 = vmax.f32 %v182, 0.0
    %vm188 = vcmask 130048
    %v190 = vsel %vm188, %v59, 0
    %v193 = vsel %vm188, %v60, 0
    %195 = vmatprep.subr.mxu0 %v185
    %196 = vmatpush1.msra.mxu0 %v184
    %197 = vmatprep.subr.mxu0 %v187
    %198 = vmatpush1.msra.mxu0 %v186
    %199 = vmatprep.subr.mxu0 0.0
    %200 = vmatpush1.msra.mxu0 0.0
    %201 = vmatprep.subr.mxu0 0.0
    %202 = vmatpush1.msra.mxu0 0.0
    %203 = vmatprep.subr.mxu0 0.0
    %204 = vmatpush1.msra.mxu0 0.0
    %205 = vmatprep.subr.mxu0 0.0
    %206 = vmatpush1.msra.mxu0 0.0
    %207 = vmatprep.subr.mxu0 0.0
    %208 = vmatpush1.msra.mxu0 0.0
    %209 = vmatprep.subr.mxu0 0.0
    %210 = vmatpush1.msra.mxu0 0.0
    %211 = vmatprep.subr.mxu0 0.0
    %212 = vmatpush1.msra.mxu0 0.0
    %213 = vmatprep.subr.mxu0 0.0
    %214 = vmatpush1.msra.mxu0 0.0
    %215 = vmatprep.subr.mxu0 0.0
    %216 = vmatpush1.msra.mxu0 0.0
    %217 = vmatprep.subr.mxu0 0.0
    %218 = vmatpush1.msra.mxu0 0.0
    %219 = vmatprep.subr.mxu0 0.0
    %220 = vmatpush1.msra.mxu0 0.0
    %221 = vmatprep.subr.mxu0 0.0
    %222 = vmatpush1.msra.mxu0 0.0
    %223 = vmatprep.subr.mxu0 0.0
    %224 = vmatpush1.msra.mxu0 0.0
    %225 = vmatprep.subr.mxu0 0.0
    %226 = vmatpush1.msra.mxu0 0.0
    %227 = vmatprep.subr.mxu0 0.0
    %228 = vmatpush1.msra.mxu0 0.0
    %229 = vmatprep.subr.mxu0 0.0
    %230 = vmatpush1.msra.mxu0 0.0
    %231 = vmatprep.subr.mxu0 0.0
    %232 = vmatpush1.msra.mxu0 0.0
    %233 = vmatprep.subr.mxu0 0.0
    %234 = vmatpush1.msra.mxu0 0.0
    %235 = vmatprep.subr.mxu0 0.0
    %236 = vmatpush1.msra.mxu0 0.0
    %237 = vmatprep.subr.mxu0 0.0
    %238 = vmatpush1.msra.mxu0 0.0
    %239 = vmatprep.subr.mxu0 0.0
    %240 = vmatpush1.msra.mxu0 0.0
    %241 = vmatprep.subr.mxu0 0.0
    %242 = vmatpush1.msra.mxu0 0.0
    %243 = vmatprep.subr.mxu0 0.0
    %244 = vmatpush1.msra.mxu0 0.0
    %245 = vmatprep.subr.mxu0 0.0
    %246 = vmatpush1.msra.mxu0 0.0
    %247 = vmatprep.subr.mxu0 0.0
    %248 = vmatpush1.msra.mxu0 0.0
    %249 = vmatprep.subr.mxu0 0.0
    %250 = vmatpush1.msra.mxu0 0.0
    %251 = vmatprep.subr.mxu0 0.0
    %252 = vmatpush1.msra.mxu0 0.0
    %253 = vmatprep.subr.mxu0 0.0
    %254 = vmatpush1.msra.mxu0 0.0
    %255 = vmatprep.subr.mxu0 0.0
    %256 = vmatpush1.msra.mxu0 0.0
    %257 = vmatprep.subr.mxu0 0.0
    %258 = vmatpush1.msra.mxu0 0.0
    %259 = vmatprep.mubr.f32.mxu0 0.0
    %260 = vmatmul.mubr.f32.gmra.mrb[0].mxu0 %v190
    %v261 = vpop.f32.mrb[0].mxu0
    %v262 = vadd.f32 0.0, %v261
    %v263 = vpop.f32.mrb[0].mxu0
    %v264 = vadd.f32 0.0, %v263
    %265 = vmatprep.mubr.f32.mxu0 0.0
    %266 = vmatmul.mubr.f32.gmra.mrb[0].mxu0 %v193
    %v267 = vpop.f32.mrb[0].mxu0
    %v268 = vadd.f32 0.0, %v267
    %v269 = vpop.f32.mrb[0].mxu0
    %v270 = vadd.f32 0.0, %v269
    %271 = vdwg.mxu0
    %v272 = vld [vmem:[%s6] sm:$0xff]
    %v273 = vld [vmem:[%s6 + $0x8] sm:$0xff]
    %v274 = vld [vmem:[%s6 + $0x10] sm:$0xff]
    %v275 = vld [vmem:[%s6 + $0x18] sm:$0xff]
    %v276 = vld [vmem:[%s6 + $0x20] sm:$0xff]
    %v277 = vld [vmem:[%s6 + $0x28] sm:$0xff]
    %v278 = vld [vmem:[%s6 + $0x30] sm:$0xff]
    %v279 = vld [vmem:[%s6 + $0x38] sm:$0xff]
    %v280 = vld [vmem:[%s6 + $0x40] sm:$0xff]
    %v281 = vld [vmem:[%s6 + $0x48] sm:$0xff]
    %v282 = vld [vmem:[%s6 + $0x50] sm:$0xff]
    %v283 = vld [vmem:[%s6 + $0x58] sm:$0xff]
    %v284 = vld [vmem:[%s6 + $0x60] sm:$0xff]
    %v285 = vld [vmem:[%s6 + $0x68] sm:$0xff]
    %v286 = vld [vmem:[%s6 + $0x70] sm:$0xff]
    %v287 = vld [vmem:[%s6 + $0x78] sm:$0xff]
    %v288 = vld [vmem:[%s6 + $0x80] sm:$0xff]
    %v289 = vld [vmem:[%s6 + $0x88] sm:$0xff]
    %v290 = vld [vmem:[%s6 + $0x90] sm:$0xff]
    %v291 = vld [vmem:[%s6 + $0x98] sm:$0xff]
    %v292 = vld [vmem:[%s6 + $0xa0] sm:$0xff]
    %v293 = vld [vmem:[%s6 + $0xa8] sm:$0xff]
    %v294 = vld [vmem:[%s6 + $0xb0] sm:$0xff]
    %v295 = vld [vmem:[%s6 + $0xb8] sm:$0xff]
    %v296 = vld [vmem:[%s6 + $0xc0] sm:$0xff]
    %v297 = vld [vmem:[%s6 + $0xc8] sm:$0xff]
    %v298 = vld [vmem:[%s6 + $0xd0] sm:$0xff]
    %v299 = vld [vmem:[%s6 + $0xd8] sm:$0xff]
    %v300 = vld [vmem:[%s6 + $0xe0] sm:$0xff]
    %v301 = vld [vmem:[%s6 + $0xe8] sm:$0xff]
    %v302 = vld [vmem:[%s6 + $0xf0] sm:$0xff]
    %v303 = vld [vmem:[%s6 + $0xf8] sm:$0xff]
    %v304 = vld [vmem:[%s6 + $0x100] sm:$0xff]
    %v305 = vld [vmem:[%s6 + $0x108] sm:$0xff]
    %v306 = vld [vmem:[%s6 + $0x110] sm:$0xff]
    %v307 = vld [vmem:[%s6 + $0x118] sm:$0xff]
    %v308 = vld [vmem:[%s6 + $0x120] sm:$0xff]
    %v309 = vld [vmem:[%s6 + $0x128] sm:$0xff]
    %v310 = vld [vmem:[%s6 + $0x130] sm:$0xff]
    %v311 = vld [vmem:[%s6 + $0x138] sm:$0xff]
    %v312 = vld [vmem:[%s6 + $0x140] sm:$0xff]
    %v313 = vld [vmem:[%s6 + $0x148] sm:$0xff]
    %v314 = vld [vmem:[%s6 + $0x150] sm:$0xff]
    %v315 = vld [vmem:[%s6 + $0x158] sm:$0xff]
    %v316 = vld [vmem:[%s6 + $0x160] sm:$0xff]
    %v317 = vld [vmem:[%s6 + $0x168] sm:$0xff]
    %v318 = vld [vmem:[%s6 + $0x170] sm:$0xff]
    %v319 = vld [vmem:[%s6 + $0x178] sm:$0xff]
    %v320 = vld [vmem:[%s6 + $0x180] sm:$0xff]
    %v321 = vld [vmem:[%s6 + $0x188] sm:$0xff]
    %v322 = vld [vmem:[%s6 + $0x190] sm:$0xff]
    %v323 = vld [vmem:[%s6 + $0x198] sm:$0xff]
    %v324 = vld [vmem:[%s6 + $0x1a0] sm:$0xff]
    %v325 = vld [vmem:[%s6 + $0x1a8] sm:$0xff]
    %v326 = vld [vmem:[%s6 + $0x1b0] sm:$0xff]
    %v327 = vld [vmem:[%s6 + $0x1b8] sm:$0xff]
    %v328 = vld [vmem:[%s6 + $0x1c0] sm:$0xff]
    %v329 = vld [vmem:[%s6 + $0x1c8] sm:$0xff]
    %v330 = vld [vmem:[%s6 + $0x1d0] sm:$0xff]
    %v331 = vld [vmem:[%s6 + $0x1d8] sm:$0xff]
    %v332 = vld [vmem:[%s6 + $0x1e0] sm:$0xff]
    %v333 = vld [vmem:[%s6 + $0x1e8] sm:$0xff]
    %v334 = vld [vmem:[%s6 + $0x1f0] sm:$0xff]
    %v335 = vld [vmem:[%s6 + $0x1f8] sm:$0xff]
    %v336 = vld [vmem:[%s6 + $0x200] sm:$0xff]
    %v337 = vld [vmem:[%s6 + $0x208] sm:$0xff]
    %v338 = vld [vmem:[%s6 + $0x210] sm:$0xff]
    %v339 = vld [vmem:[%s6 + $0x218] sm:$0xff]
    %v340 = vld [vmem:[%s6 + $0x220] sm:$0xff]
    %v341 = vld [vmem:[%s6 + $0x228] sm:$0xff]
    %v342 = vld [vmem:[%s6 + $0x230] sm:$0xff]
    %v343 = vld [vmem:[%s6 + $0x238] sm:$0xff]
    %v344 = vld [vmem:[%s6 + $0x240] sm:$0xff]
    %v345 = vld [vmem:[%s6 + $0x248] sm:$0xff]
    %v346 = vld [vmem:[%s6 + $0x250] sm:$0xff]
    %v347 = vld [vmem:[%s6 + $0x258] sm:$0xff]
    %v348 = vld [vmem:[%s6 + $0x260] sm:$0xff]
    %v349 = vld [vmem:[%s6 + $0x268] sm:$0xff]
    %v350 = vld [vmem:[%s6 + $0x270] sm:$0xff]
    %v351 = vld [vmem:[%s6 + $0x278] sm:$0xff]
    %v352 = vld [vmem:[%s6 + $0x280] sm:$0xff]
    %v353 = vld [vmem:[%s6 + $0x288] sm:$0xff]
    %v354 = vld [vmem:[%s6 + $0x290] sm:$0xff]
    %v355 = vld [vmem:[%s6 + $0x298] sm:$0xff]
    %v356 = vld [vmem:[%s6 + $0x2a0] sm:$0xff]
    %v357 = vld [vmem:[%s6 + $0x2a8] sm:$0xff]
    %v358 = vld [vmem:[%s6 + $0x2b0] sm:$0xff]
    %v359 = vld [vmem:[%s6 + $0x2b8] sm:$0xff]
    %v360 = vld [vmem:[%s6 + $0x2c0] sm:$0xff]
    %v361 = vld [vmem:[%s6 + $0x2c8] sm:$0xff]
    %v362 = vld [vmem:[%s6 + $0x2d0] sm:$0xff]
    %v363 = vld [vmem:[%s6 + $0x2d8] sm:$0xff]
    %v364 = vld [vmem:[%s6 + $0x2e0] sm:$0xff]
    %v365 = vld [vmem:[%s6 + $0x2e8] sm:$0xff]
    %v366 = vld [vmem:[%s6 + $0x2f0] sm:$0xff]
    %v367 = vld [vmem:[%s6 + $0x2f8] sm:$0xff]
    %v368 = vld [vmem:[%s6 + $0x300] sm:$0xff]
    %v369 = vld [vmem:[%s6 + $0x308] sm:$0xff]
    %v370 = vld [vmem:[%s6 + $0x310] sm:$0xff]
    %v371 = vld [vmem:[%s6 + $0x318] sm:$0xff]
    %v372 = vld [vmem:[%s6 + $0x320] sm:$0xff]
    %v373 = vld [vmem:[%s6 + $0x328] sm:$0xff]
    %v374 = vld [vmem:[%s6 + $0x330] sm:$0xff]
    %v375 = vld [vmem:[%s6 + $0x338] sm:$0xff]
    %v376 = vld [vmem:[%s6 + $0x340] sm:$0xff]
    %v377 = vld [vmem:[%s6 + $0x348] sm:$0xff]
    %v378 = vld [vmem:[%s6 + $0x350] sm:$0xff]
    %v379 = vld [vmem:[%s6 + $0x358] sm:$0xff]
    %v380 = vld [vmem:[%s6 + $0x360] sm:$0xff]
    %v381 = vld [vmem:[%s6 + $0x368] sm:$0xff]
    %v382 = vld [vmem:[%s6 + $0x370] sm:$0xff]
    %v383 = vld [vmem:[%s6 + $0x378] sm:$0xff]
    %v384 = vld [vmem:[%s6 + $0x380] sm:$0xff]
    %v385 = vld [vmem:[%s6 + $0x388] sm:$0xff]
    %v386 = vld [vmem:[%s6 + $0x390] sm:$0xff]
    %v387 = vld [vmem:[%s6 + $0x398] sm:$0xff]
    %v388 = vld [vmem:[%s6 + $0x3a0] sm:$0xff]
    %v389 = vld [vmem:[%s6 + $0x3a8] sm:$0xff]
    %v390 = vld [vmem:[%s6 + $0x3b0] sm:$0xff]
    %v391 = vld [vmem:[%s6 + $0x3b8] sm:$0xff]
    %v392 = vld [vmem:[%s6 + $0x3c0] sm:$0xff]
    %v393 = vld [vmem:[%s6 + $0x3c8] sm:$0xff]
    %v394 = vld [vmem:[%s6 + $0x3d0] sm:$0xff]
    %v395 = vld [vmem:[%s6 + $0x3d8] sm:$0xff]
    %v396 = vld [vmem:[%s6 + $0x3e0] sm:$0xff]
    %v397 = vld [vmem:[%s6 + $0x3e8] sm:$0xff]
    %v398 = vld [vmem:[%s6 + $0x3f0] sm:$0xff]
    %v399 = vld [vmem:[%s6 + $0x3f8] sm:$0xff]
    %v400 = vld [vmem:[%s6 + $0x400] sm:$0xff]
    %v401 = vld [vmem:[%s6 + $0x408] sm:$0xff]
    %v402 = vld [vmem:[%s6 + $0x410] sm:$0xff]
    %v403 = vld [vmem:[%s6 + $0x418] sm:$0xff]
    %v404 = vld [vmem:[%s6 + $0x420] sm:$0xff]
    %v405 = vld [vmem:[%s6 + $0x428] sm:$0xff]
    %v406 = vld [vmem:[%s6 + $0x430] sm:$0xff]
    %v407 = vld [vmem:[%s6 + $0x438] sm:$0xff]
    %v408 = vld [vmem:[%s6 + $0x440] sm:$0xff]
    %v409 = vld [vmem:[%s6 + $0x448] sm:$0xff]
    %v410 = vld [vmem:[%s6 + $0x450] sm:$0xff]
    %v411 = vld [vmem:[%s6 + $0x458] sm:$0xff]
    %v412 = vld [vmem:[%s6 + $0x460] sm:$0xff]
    %v413 = vld [vmem:[%s6 + $0x468] sm:$0xff]
    %v414 = vld [vmem:[%s6 + $0x470] sm:$0xff]
    %v415 = vld [vmem:[%s6 + $0x478] sm:$0xff]
    %v416 = vld [vmem:[%s6 + $0x480] sm:$0xff]
    %v417 = vld [vmem:[%s6 + $0x488] sm:$0xff]
    %v418 = vld [vmem:[%s6 + $0x490] sm:$0xff]
    %v419 = vld [vmem:[%s6 + $0x498] sm:$0xff]
    %v420 = vld [vmem:[%s6 + $0x4a0] sm:$0xff]
    %v421 = vld [vmem:[%s6 + $0x4a8] sm:$0xff]
    %v422 = vld [vmem:[%s6 + $0x4b0] sm:$0xff]
    %v423 = vld [vmem:[%s6 + $0x4b8] sm:$0xff]
    %v424 = vld [vmem:[%s6 + $0x4c0] sm:$0xff]
    %v425 = vld [vmem:[%s6 + $0x4c8] sm:$0xff]
    %v426 = vld [vmem:[%s6 + $0x4d0] sm:$0xff]
    %v427 = vld [vmem:[%s6 + $0x4d8] sm:$0xff]
    %v428 = vld [vmem:[%s6 + $0x4e0] sm:$0xff]
    %v429 = vld [vmem:[%s6 + $0x4e8] sm:$0xff]
    %v430 = vld [vmem:[%s6 + $0x4f0] sm:$0xff]
    %v431 = vld [vmem:[%s6 + $0x4f8] sm:$0xff]
    %v432 = vld [vmem:[%s7] sm:$0x3]
    %v434 = vlaneseq
    %v435 = vshrl.u32 %v434, 7
    %v436 = vsub.s32 0, %v435
    %v437 = vrot.slane %v432, %v436
    %v438 = vlaneseq
    %v439 = vshrl.u32 %v438, 7
    %v440 = vsub.s32 1, %v439
    %v441 = vrot.slane %v432, %v440
    %444 = vmatprep.subr.mxu0 %v273
    %445 = vmatpush1.msra.mxu0 %v272
    %446 = vmatprep.subr.mxu0 %v275
    %447 = vmatpush1.msra.mxu0 %v274
    %448 = vmatprep.subr.mxu0 %v277
    %449 = vmatpush1.msra.mxu0 %v276
    %450 = vmatprep.subr.mxu0 %v279
    %451 = vmatpush1.msra.mxu0 %v278
    %452 = vmatprep.subr.mxu0 %v281
    %453 = vmatpush1.msra.mxu0 %v280
    %454 = vmatprep.subr.mxu0 %v283
    %455 = vmatpush1.msra.mxu0 %v282
    %456 = vmatprep.subr.mxu0 %v285
    %457 = vmatpush1.msra.mxu0 %v284
    %458 = vmatprep.subr.mxu0 %v287
    %459 = vmatpush1.msra.mxu0 %v286
    %460 = vmatprep.subr.mxu0 %v289
    %461 = vmatpush1.msra.mxu0 %v288
    %462 = vmatprep.subr.mxu0 %v291
    %463 = vmatpush1.msra.mxu0 %v290
    %464 = vmatprep.subr.mxu0 %v293
    %465 = vmatpush1.msra.mxu0 %v292
    %466 = vmatprep.subr.mxu0 %v295
    %467 = vmatpush1.msra.mxu0 %v294
    %468 = vmatprep.subr.mxu0 %v297
    %469 = vmatpush1.msra.mxu0 %v296
    %470 = vmatprep.subr.mxu0 %v299
    %471 = vmatpush1.msra.mxu0 %v298
    %472 = vmatprep.subr.mxu0 %v301
    %473 = vmatpush1.msra.mxu0 %v300
    %474 = vmatprep.subr.mxu0 %v303
    %475 = vmatpush1.msra.mxu0 %v302
    %476 = vmatprep.subr.mxu0 %v305
    %477 = vmatpush1.msra.mxu0 %v304
    %478 = vmatprep.subr.mxu0 %v307
    %479 = vmatpush1.msra.mxu0 %v306
    %480 = vmatprep.subr.mxu0 %v309
    %481 = vmatpush1.msra.mxu0 %v308
    %482 = vmatprep.subr.mxu0 %v311
    %483 = vmatpush1.msra.mxu0 %v310
    %484 = vmatprep.subr.mxu0 %v313
    %485 = vmatpush1.msra.mxu0 %v312
    %486 = vmatprep.subr.mxu0 %v315
    %487 = vmatpush1.msra.mxu0 %v314
    %488 = vmatprep.subr.mxu0 %v317
    %489 = vmatpush1.msra.mxu0 %v316
    %490 = vmatprep.subr.mxu0 %v319
    %491 = vmatpush1.msra.mxu0 %v318
    %492 = vmatprep.subr.mxu0 %v321
    %493 = vmatpush1.msra.mxu0 %v320
    %494 = vmatprep.subr.mxu0 %v323
    %495 = vmatpush1.msra.mxu0 %v322
    %496 = vmatprep.subr.mxu0 %v325
    %497 = vmatpush1.msra.mxu0 %v324
    %498 = vmatprep.subr.mxu0 %v327
    %499 = vmatpush1.msra.mxu0 %v326
    %500 = vmatprep.subr.mxu0 %v329
    %501 = vmatpush1.msra.mxu0 %v328
    %502 = vmatprep.subr.mxu0 %v331
    %503 = vmatpush1.msra.mxu0 %v330
    %504 = vmatprep.subr.mxu0 %v333
    %505 = vmatpush1.msra.mxu0 %v332
    %506 = vmatprep.subr.mxu0 %v335
    %507 = vmatpush1.msra.mxu0 %v334
    %508 = vmatprep.mubr.f32.mxu0 %v264
    %509 = vmatmul.mubr.f32.gmra.mrb[0].mxu0 %v262
    %v510 = vpop.f32.mrb[0].mxu0
    %v511 = vadd.f32 %v437, %v510
    %v512 = vpop.f32.mrb[0].mxu0
    %v513 = vadd.f32 %v441, %v512
    %514 = vdwg.mxu0
    %515 = vmatprep.subr.mxu0 %v337
    %516 = vmatpush1.msra.mxu0 %v336
    %517 = vmatprep.subr.mxu0 %v339
    %518 = vmatpush1.msra.mxu0 %v338
    %519 = vmatprep.subr.mxu0 %v341
    %520 = vmatpush1.msra.mxu0 %v340
    %521 = vmatprep.subr.mxu0 %v343
    %522 = vmatpush1.msra.mxu0 %v342
    %523 = vmatprep.subr.mxu0 %v345
    %524 = vmatpush1.msra.mxu0 %v344
    %525 = vmatprep.subr.mxu0 %v347
    %526 = vmatpush1.msra.mxu0 %v346
    %527 = vmatprep.subr.mxu0 %v349
    %528 = vmatpush1.msra.mxu0 %v348
    %529 = vmatprep.subr.mxu0 %v351
    %530 = vmatpush1.msra.mxu0 %v350
    %531 = vmatprep.subr.mxu0 %v353
    %532 = vmatpush1.msra.mxu0 %v352
    %533 = vmatprep.subr.mxu0 %v355
    %534 = vmatpush1.msra.mxu0 %v354
    %535 = vmatprep.subr.mxu0 %v357
    %536 = vmatpush1.msra.mxu0 %v356
    %537 = vmatprep.subr.mxu0 %v359
    %538 = vmatpush1.msra.mxu0 %v358
    %539 = vmatprep.subr.mxu0 %v361
    %540 = vmatpush1.msra.mxu0 %v360
    %541 = vmatprep.subr.mxu0 %v363
    %542 = vmatpush1.msra.mxu0 %v362
    %543 = vmatprep.subr.mxu0 %v365
    %544 = vmatpush1.msra.mxu0 %v364
    %545 = vmatprep.subr.mxu0 %v367
    %546 = vmatpush1.msra.mxu0 %v366
    %547 = vmatprep.subr.mxu0 %v369
    %548 = vmatpush1.msra.mxu0 %v368
    %549 = vmatprep.subr.mxu0 %v371
    %550 = vmatpush1.msra.mxu0 %v370
    %551 = vmatprep.subr.mxu0 %v373
    %552 = vmatpush1.msra.mxu0 %v372
    %553 = vmatprep.subr.mxu0 %v375
    %554 = vmatpush1.msra.mxu0 %v374
    %555 = vmatprep.subr.mxu0 %v377
    %556 = vmatpush1.msra.mxu0 %v376
    %557 = vmatprep.subr.mxu0 %v379
    %558 = vmatpush1.msra.mxu0 %v378
    %559 = vmatprep.subr.mxu0 %v381
    %560 = vmatpush1.msra.mxu0 %v380
    %561 = vmatprep.subr.mxu0 %v383
    %562 = vmatpush1.msra.mxu0 %v382
    %563 = vmatprep.subr.mxu0 %v385
    %564 = vmatpush1.msra.mxu0 %v384
    %565 = vmatprep.subr.mxu0 %v387
    %566 = vmatpush1.msra.mxu0 %v386
    %567 = vmatprep.subr.mxu0 %v389
    %568 = vmatpush1.msra.mxu0 %v388
    %569 = vmatprep.subr.mxu0 %v391
    %570 = vmatpush1.msra.mxu0 %v390
    %571 = vmatprep.subr.mxu0 %v393
    %572 = vmatpush1.msra.mxu0 %v392
    %573 = vmatprep.subr.mxu0 %v395
    %574 = vmatpush1.msra.mxu0 %v394
    %575 = vmatprep.subr.mxu0 %v397
    %576 = vmatpush1.msra.mxu0 %v396
    %577 = vmatprep.subr.mxu0 %v399
    %578 = vmatpush1.msra.mxu0 %v398
    %579 = vmatprep.mubr.f32.mxu0 %v270
    %580 = vmatmul.mubr.f32.gmra.mrb[0].mxu0 %v268
    %v581 = vpop.f32.mrb[0].mxu0
    %v582 = vadd.f32 %v511, %v581
    %v583 = vpop.f32.mrb[0].mxu0
    %v584 = vadd.f32 %v513, %v583
    %585 = vdwg.mxu0
    %586 = vmatprep.subr.mxu0 %v401
    %587 = vmatpush1.msra.mxu0 %v400
    %588 = vmatprep.subr.mxu0 %v403
    %589 = vmatpush1.msra.mxu0 %v402
    %590 = vmatprep.subr.mxu0 %v405
    %591 = vmatpush1.msra.mxu0 %v404
    %592 = vmatprep.subr.mxu0 %v407
    %593 = vmatpush1.msra.mxu0 %v406
    %594 = vmatprep.subr.mxu0 %v409
    %595 = vmatpush1.msra.mxu0 %v408
    %596 = vmatprep.subr.mxu0 %v411
    %597 = vmatpush1.msra.mxu0 %v410
    %598 = vmatprep.subr.mxu0 %v413
    %599 = vmatpush1.msra.mxu0 %v412
    %600 = vmatprep.subr.mxu0 %v415
    %601 = vmatpush1.msra.mxu0 %v414
    %602 = vmatprep.subr.mxu0 %v417
    %603 = vmatpush1.msra.mxu0 %v416
    %604 = vmatprep.subr.mxu0 %v419
    %605 = vmatpush1.msra.mxu0 %v418
    %606 = vmatprep.subr.mxu0 %v421
    %607 = vmatpush1.msra.mxu0 %v420
    %608 = vmatprep.subr.mxu0 %v423
    %609 = vmatpush1.msra.mxu0 %v422
    %610 = vmatprep.subr.mxu0 %v425
    %611 = vmatpush1.msra.mxu0 %v424
    %612 = vmatprep.subr.mxu0 %v427
    %613 = vmatpush1.msra.mxu0 %v426
    %614 = vmatprep.subr.mxu0 %v429
    %615 = vmatpush1.msra.mxu0 %v428
    %616 = vmatprep.subr.mxu0 %v431
    %617 = vmatpush1.msra.mxu0 %v430
    %618 = vmatprep.subr.mxu0 0.0
    %619 = vmatpush1.msra.mxu0 0.0
    %620 = vmatprep.subr.mxu0 0.0
    %621 = vmatpush1.msra.mxu0 0.0
    %622 = vmatprep.subr.mxu0 0.0
    %623 = vmatpush1.msra.mxu0 0.0
    %624 = vmatprep.subr.mxu0 0.0
    %625 = vmatpush1.msra.mxu0 0.0
    %626 = vmatprep.subr.mxu0 0.0
    %627 = vmatpush1.msra.mxu0 0.0
    %628 = vmatprep.subr.mxu0 0.0
    %629 = vmatpush1.msra.mxu0 0.0
    %630 = vmatprep.subr.mxu0 0.0
    %631 = vmatpush1.msra.mxu0 0.0
    %632 = vmatprep.subr.mxu0 0.0
    %633 = vmatpush1.msra.mxu0 0.0
    %634 = vmatprep.subr.mxu0 0.0
    %635 = vmatpush1.msra.mxu0 0.0
    %636 = vmatprep.subr.mxu0 0.0
    %637 = vmatpush1.msra.mxu0 0.0
    %638 = vmatprep.subr.mxu0 0.0
    %639 = vmatpush1.msra.mxu0 0.0
    %640 = vmatprep.subr.mxu0 0.0
    %641 = vmatpush1.msra.mxu0 0.0
    %642 = vmatprep.subr.mxu0 0.0
    %643 = vmatpush1.msra.mxu0 0.0
    %644 = vmatprep.subr.mxu0 0.0
    %645 = vmatpush1.msra.mxu0 0.0
    %646 = vmatprep.subr.mxu0 0.0
    %647 = vmatpush1.msra.mxu0 0.0
    %648 = vmatprep.subr.mxu0 0.0
    %649 = vmatpush1.msra.mxu0 0.0
    %650 = vmatprep.mubr.f32.mxu0 0.0
    %651 = vmatmul.mubr.f32.gmra.mrb[0].mxu0 %v58
    %v652 = vpop.f32.mrb[0].mxu0
    %v653 = vadd.f32 %v582, %v652
    %v654 = vpop.f32.mrb[0].mxu0
    %v655 = vadd.f32 %v584, %v654
    %656 = vdwg.mxu0
    %v657 = vmax.f32 %v653, 0.0
    %v658 = vmax.f32 %v655, 0.0
    %v659 = vrot.slane %v657, 4
    %v660 = vadd.f32 %v657, %v659
    %v661 = vrot.slane %v660, 2
    %v662 = vadd.f32 %v660, %v661
    %v663 = vrot.slane %v662, 1
    %v664 = vadd.f32 %v662, %v663
    %v665 = vrot.slane %v658, 4
    %v666 = vadd.f32 %v658, %v665
    %v667 = vrot.slane %v666, 2
    %v668 = vadd.f32 %v666, %v667
    %v669 = vrot.slane %v668, 1
    %v670 = vadd.f32 %v668, %v669
    %v671 = vrcp.pop 8.0
    %v672 = vmul.f32 %v664, %v671
    %v673 = vmul.f32 %v670, %v671
    %v674 = vadd.f32 %v184, %v186
    %v675 = vrot.slane %v674, 4
    %v676 = vadd.f32 %v674, %v675
    %v677 = vrot.slane %v676, 2
    %v678 = vadd.f32 %v676, %v677
    %v679 = vrot.slane %v678, 1
    %v680 = vadd.f32 %v678, %v679
    %v681 = vadd.f32 %v185, %v187
    %v682 = vrot.slane %v681, 4
    %v683 = vadd.f32 %v681, %v682
    %v684 = vrot.slane %v683, 2
    %v685 = vadd.f32 %v683, %v684
    %v686 = vrot.slane %v685, 1
    %v687 = vadd.f32 %v685, %v686
    %v688 = vrcp.pop 16.0
    %v689 = vmul.f32 %v680, %v688
    %v690 = vmul.f32 %v687, %v688
    %v691 = vld [vmem:[%s2] sm:$0x1]
    %v692 = vld [vmem:[%s8] sm:$0xff]
    %v693 = vld [vmem:[%s8 + $0x8] sm:$0xff]
    %v694 = vld [vmem:[%s8 + $0x10] sm:$0xff]
    %v695 = vld [vmem:[%s8 + $0x18] sm:$0xff]
    %v696 = vld [vmem:[%s8 + $0x20] sm:$0xff]
    %v697 = vld [vmem:[%s8 + $0x28] sm:$0xff]
    %v698 = vld [vmem:[%s8 + $0x30] sm:$0xff]
    %v699 = vld [vmem:[%s8 + $0x38] sm:$0xff]
    %v700 = vld [vmem:[%s8 + $0x40] sm:$0xff]
    %v701 = vld [vmem:[%s8 + $0x48] sm:$0xff]
    %v702 = vld [vmem:[%s8 + $0x50] sm:$0xff]
    %v703 = vld [vmem:[%s8 + $0x58] sm:$0xff]
    %v704 = vld [vmem:[%s8 + $0x60] sm:$0xff]
    %v705 = vld [vmem:[%s8 + $0x68] sm:$0xff]
    %v706 = vld [vmem:[%s8 + $0x70] sm:$0xff]
    %v707 = vld [vmem:[%s8 + $0x78] sm:$0xff]
    %v708 = vld [vmem:[%s8 + $0x80] sm:$0xff]
    %v709 = vld [vmem:[%s8 + $0x88] sm:$0xff]
    %v710 = vld [vmem:[%s8 + $0x90] sm:$0xff]
    %v711 = vld [vmem:[%s8 + $0x98] sm:$0xff]
    %v712 = vld [vmem:[%s8 + $0xa0] sm:$0xff]
    %v713 = vld [vmem:[%s8 + $0xa8] sm:$0xff]
    %v714 = vld [vmem:[%s8 + $0xb0] sm:$0xff]
    %v715 = vld [vmem:[%s8 + $0xb8] sm:$0xff]
    %v716 = vld [vmem:[%s8 + $0xc0] sm:$0xff]
    %v717 = vld [vmem:[%s8 + $0xc8] sm:$0xff]
    %v718 = vld [vmem:[%s8 + $0xd0] sm:$0xff]
    %v719 = vld [vmem:[%s8 + $0xd8] sm:$0xff]
    %v720 = vld [vmem:[%s8 + $0xe0] sm:$0xff]
    %v721 = vld [vmem:[%s8 + $0xe8] sm:$0xff]
    %v722 = vld [vmem:[%s8 + $0xf0] sm:$0xff]
    %v723 = vld [vmem:[%s8 + $0xf8] sm:$0xff]
    %v724 = vld [vmem:[%s8 + $0x100] sm:$0xff]
    %v725 = vld [vmem:[%s8 + $0x108] sm:$0xff]
    %v726 = vld [vmem:[%s8 + $0x110] sm:$0xff]
    %v727 = vld [vmem:[%s8 + $0x118] sm:$0xff]
    %v728 = vld [vmem:[%s8 + $0x120] sm:$0xff]
    %v729 = vld [vmem:[%s8 + $0x128] sm:$0xff]
    %v730 = vld [vmem:[%s8 + $0x130] sm:$0xff]
    %v731 = vld [vmem:[%s8 + $0x138] sm:$0xff]
    %v732 = vld [vmem:[%s8 + $0x140] sm:$0xff]
    %v733 = vld [vmem:[%s8 + $0x148] sm:$0xff]
    %v734 = vld [vmem:[%s8 + $0x150] sm:$0xff]
    %v735 = vld [vmem:[%s8 + $0x158] sm:$0xff]
    %v736 = vld [vmem:[%s8 + $0x160] sm:$0xff]
    %v737 = vld [vmem:[%s8 + $0x168] sm:$0xff]
    %v738 = vld [vmem:[%s8 + $0x170] sm:$0xff]
    %v739 = vld [vmem:[%s8 + $0x178] sm:$0xff]
    %v740 = vld [vmem:[%s8 + $0x180] sm:$0xff]
    %v741 = vld [vmem:[%s8 + $0x188] sm:$0xff]
    %v742 = vld [vmem:[%s8 + $0x190] sm:$0xff]
    %v743 = vld [vmem:[%s8 + $0x198] sm:$0xff]
    %v744 = vld [vmem:[%s8 + $0x1a0] sm:$0xff]
    %v745 = vld [vmem:[%s8 + $0x1a8] sm:$0xff]
    %v746 = vld [vmem:[%s8 + $0x1b0] sm:$0xff]
    %v747 = vld [vmem:[%s8 + $0x1b8] sm:$0xff]
    %v748 = vld [vmem:[%s8 + $0x1c0] sm:$0xff]
    %v749 = vld [vmem:[%s8 + $0x1c8] sm:$0xff]
    %v750 = vld [vmem:[%s8 + $0x1d0] sm:$0xff]
    %v751 = vld [vmem:[%s8 + $0x1d8] sm:$0xff]
    %v752 = vld [vmem:[%s8 + $0x1e0] sm:$0xff]
    %v753 = vld [vmem:[%s8 + $0x1e8] sm:$0xff]
    %v754 = vld [vmem:[%s8 + $0x1f0] sm:$0xff]
    %v755 = vld [vmem:[%s8 + $0x1f8] sm:$0xff]
    %v756 = vld [vmem:[%s8 + $0x200] sm:$0xff]
    %v757 = vld [vmem:[%s8 + $0x208] sm:$0xff]
    %v758 = vld [vmem:[%s8 + $0x210] sm:$0xff]
    %v759 = vld [vmem:[%s8 + $0x218] sm:$0xff]
    %v760 = vld [vmem:[%s8 + $0x220] sm:$0xff]
    %v761 = vld [vmem:[%s8 + $0x228] sm:$0xff]
    %v762 = vld [vmem:[%s8 + $0x230] sm:$0xff]
    %v763 = vld [vmem:[%s8 + $0x238] sm:$0xff]
    %v764 = vld [vmem:[%s8 + $0x240] sm:$0xff]
    %v765 = vld [vmem:[%s8 + $0x248] sm:$0xff]
    %v766 = vld [vmem:[%s8 + $0x250] sm:$0xff]
    %v767 = vld [vmem:[%s8 + $0x258] sm:$0xff]
    %v768 = vld [vmem:[%s8 + $0x260] sm:$0xff]
    %v769 = vld [vmem:[%s8 + $0x268] sm:$0xff]
    %v770 = vld [vmem:[%s8 + $0x270] sm:$0xff]
    %v771 = vld [vmem:[%s8 + $0x278] sm:$0xff]
    %v772 = vld [vmem:[%s8 + $0x280] sm:$0xff]
    %v773 = vld [vmem:[%s8 + $0x288] sm:$0xff]
    %v774 = vld [vmem:[%s8 + $0x290] sm:$0xff]
    %v775 = vld [vmem:[%s8 + $0x298] sm:$0xff]
    %v776 = vld [vmem:[%s8 + $0x2a0] sm:$0xff]
    %v777 = vld [vmem:[%s8 + $0x2a8] sm:$0xff]
    %v778 = vld [vmem:[%s8 + $0x2b0] sm:$0xff]
    %v779 = vld [vmem:[%s8 + $0x2b8] sm:$0xff]
    %v780 = vld [vmem:[%s8 + $0x2c0] sm:$0xff]
    %v781 = vld [vmem:[%s8 + $0x2c8] sm:$0xff]
    %v782 = vld [vmem:[%s8 + $0x2d0] sm:$0xff]
    %v783 = vld [vmem:[%s8 + $0x2d8] sm:$0xff]
    %v784 = vld [vmem:[%s8 + $0x2e0] sm:$0xff]
    %v785 = vld [vmem:[%s8 + $0x2e8] sm:$0xff]
    %v786 = vld [vmem:[%s8 + $0x2f0] sm:$0xff]
    %v787 = vld [vmem:[%s8 + $0x2f8] sm:$0xff]
    %v788 = vld [vmem:[%s8 + $0x300] sm:$0xff]
    %v789 = vld [vmem:[%s8 + $0x308] sm:$0xff]
    %v790 = vld [vmem:[%s8 + $0x310] sm:$0xff]
    %v791 = vld [vmem:[%s8 + $0x318] sm:$0xff]
    %v792 = vld [vmem:[%s8 + $0x320] sm:$0xff]
    %v793 = vld [vmem:[%s8 + $0x328] sm:$0xff]
    %v794 = vld [vmem:[%s8 + $0x330] sm:$0xff]
    %v795 = vld [vmem:[%s8 + $0x338] sm:$0xff]
    %v796 = vld [vmem:[%s8 + $0x340] sm:$0xff]
    %v797 = vld [vmem:[%s8 + $0x348] sm:$0xff]
    %v798 = vld [vmem:[%s8 + $0x350] sm:$0xff]
    %v799 = vld [vmem:[%s8 + $0x358] sm:$0xff]
    %v800 = vld [vmem:[%s8 + $0x360] sm:$0xff]
    %v801 = vld [vmem:[%s8 + $0x368] sm:$0xff]
    %v802 = vld [vmem:[%s8 + $0x370] sm:$0xff]
    %v803 = vld [vmem:[%s8 + $0x378] sm:$0xff]
    %v804 = vld [vmem:[%s8 + $0x380] sm:$0xff]
    %v805 = vld [vmem:[%s8 + $0x388] sm:$0xff]
    %v806 = vld [vmem:[%s8 + $0x390] sm:$0xff]
    %v807 = vld [vmem:[%s8 + $0x398] sm:$0xff]
    %v808 = vld [vmem:[%s8 + $0x3a0] sm:$0xff]
    %v809 = vld [vmem:[%s8 + $0x3a8] sm:$0xff]
    %v810 = vld [vmem:[%s8 + $0x3b0] sm:$0xff]
    %v811 = vld [vmem:[%s8 + $0x3b8] sm:$0xff]
    %v812 = vld [vmem:[%s8 + $0x3c0] sm:$0xff]
    %v813 = vld [vmem:[%s8 + $0x3c8] sm:$0xff]
    %v814 = vld [vmem:[%s8 + $0x3d0] sm:$0xff]
    %v815 = vld [vmem:[%s8 + $0x3d8] sm:$0xff]
    %v816 = vld [vmem:[%s8 + $0x3e0] sm:$0xff]
    %v817 = vld [vmem:[%s8 + $0x3e8] sm:$0xff]
    %v818 = vld [vmem:[%s8 + $0x3f0] sm:$0xff]
    %v819 = vld [vmem:[%s8 + $0x3f8] sm:$0xff]
    %v820 = vld [vmem:[%s8 + $0x400] sm:$0xff]
    %v821 = vld [vmem:[%s8 + $0x408] sm:$0xff]
    %v822 = vld [vmem:[%s8 + $0x410] sm:$0xff]
    %v823 = vld [vmem:[%s8 + $0x418] sm:$0xff]
    %v824 = vld [vmem:[%s8 + $0x420] sm:$0xff]
    %v825 = vld [vmem:[%s8 + $0x428] sm:$0xff]
    %v826 = vld [vmem:[%s8 + $0x430] sm:$0xff]
    %v827 = vld [vmem:[%s8 + $0x438] sm:$0xff]
    %v828 = vld [vmem:[%s8 + $0x440] sm:$0xff]
    %v829 = vld [vmem:[%s8 + $0x448] sm:$0xff]
    %v830 = vld [vmem:[%s8 + $0x450] sm:$0xff]
    %v831 = vld [vmem:[%s8 + $0x458] sm:$0xff]
    %v832 = vld [vmem:[%s8 + $0x460] sm:$0xff]
    %v833 = vld [vmem:[%s8 + $0x468] sm:$0xff]
    %v834 = vld [vmem:[%s8 + $0x470] sm:$0xff]
    %v835 = vld [vmem:[%s8 + $0x478] sm:$0xff]
    %v836 = vld [vmem:[%s8 + $0x480] sm:$0xff]
    %v837 = vld [vmem:[%s8 + $0x488] sm:$0xff]
    %v838 = vld [vmem:[%s8 + $0x490] sm:$0xff]
    %v839 = vld [vmem:[%s8 + $0x498] sm:$0xff]
    %v840 = vld [vmem:[%s8 + $0x4a0] sm:$0xff]
    %v841 = vld [vmem:[%s8 + $0x4a8] sm:$0xff]
    %v842 = vld [vmem:[%s8 + $0x4b0] sm:$0xff]
    %v843 = vld [vmem:[%s8 + $0x4b8] sm:$0xff]
    %v844 = vld [vmem:[%s8 + $0x4c0] sm:$0xff]
    %v845 = vld [vmem:[%s8 + $0x4c8] sm:$0xff]
    %v846 = vld [vmem:[%s8 + $0x4d0] sm:$0xff]
    %v847 = vld [vmem:[%s8 + $0x4d8] sm:$0xff]
    %v848 = vld [vmem:[%s8 + $0x4e0] sm:$0xff]
    %v849 = vld [vmem:[%s8 + $0x4e8] sm:$0xff]
    %v850 = vld [vmem:[%s8 + $0x4f0] sm:$0xff]
    %v851 = vld [vmem:[%s8 + $0x4f8] sm:$0xff]
    %v852 = vld [vmem:[%s9] sm:$0x3]
    %v854 = vlaneseq
    %v855 = vshrl.u32 %v854, 7
    %v856 = vsub.s32 0, %v855
    %v857 = vrot.slane %v852, %v856
    %v858 = vlaneseq
    %v859 = vshrl.u32 %v858, 7
    %v860 = vsub.s32 1, %v859
    %v861 = vrot.slane %v852, %v860
    %864 = vmatprep.subr.mxu0 %v693
    %865 = vmatpush1.msra.mxu0 %v692
    %866 = vmatprep.subr.mxu0 %v695
    %867 = vmatpush1.msra.mxu0 %v694
    %868 = vmatprep.subr.mxu0 %v697
    %869 = vmatpush1.msra.mxu0 %v696
    %870 = vmatprep.subr.mxu0 %v699
    %871 = vmatpush1.msra.mxu0 %v698
    %872 = vmatprep.subr.mxu0 %v701
    %873 = vmatpush1.msra.mxu0 %v700
    %874 = vmatprep.subr.mxu0 %v703
    %875 = vmatpush1.msra.mxu0 %v702
    %876 = vmatprep.subr.mxu0 %v705
    %877 = vmatpush1.msra.mxu0 %v704
    %878 = vmatprep.subr.mxu0 %v707
    %879 = vmatpush1.msra.mxu0 %v706
    %880 = vmatprep.subr.mxu0 %v709
    %881 = vmatpush1.msra.mxu0 %v708
    %882 = vmatprep.subr.mxu0 %v711
    %883 = vmatpush1.msra.mxu0 %v710
    %884 = vmatprep.subr.mxu0 %v713
    %885 = vmatpush1.msra.mxu0 %v712
    %886 = vmatprep.subr.mxu0 %v715
    %887 = vmatpush1.msra.mxu0 %v714
    %888 = vmatprep.subr.mxu0 %v717
    %889 = vmatpush1.msra.mxu0 %v716
    %890 = vmatprep.subr.mxu0 %v719
    %891 = vmatpush1.msra.mxu0 %v718
    %892 = vmatprep.subr.mxu0 %v721
    %893 = vmatpush1.msra.mxu0 %v720
    %894 = vmatprep.subr.mxu0 %v723
    %895 = vmatpush1.msra.mxu0 %v722
    %896 = vmatprep.subr.mxu0 %v725
    %897 = vmatpush1.msra.mxu0 %v724
    %898 = vmatprep.subr.mxu0 %v727
    %899 = vmatpush1.msra.mxu0 %v726
    %900 = vmatprep.subr.mxu0 %v729
    %901 = vmatpush1.msra.mxu0 %v728
    %902 = vmatprep.subr.mxu0 %v731
    %903 = vmatpush1.msra.mxu0 %v730
    %904 = vmatprep.subr.mxu0 %v733
    %905 = vmatpush1.msra.mxu0 %v732
    %906 = vmatprep.subr.mxu0 %v735
    %907 = vmatpush1.msra.mxu0 %v734
    %908 = vmatprep.subr.mxu0 %v737
    %909 = vmatpush1.msra.mxu0 %v736
    %910 = vmatprep.subr.mxu0 %v739
    %911 = vmatpush1.msra.mxu0 %v738
    %912 = vmatprep.subr.mxu0 %v741
    %913 = vmatpush1.msra.mxu0 %v740
    %914 = vmatprep.subr.mxu0 %v743
    %915 = vmatpush1.msra.mxu0 %v742
    %916 = vmatprep.subr.mxu0 %v745
    %917 = vmatpush1.msra.mxu0 %v744
    %918 = vmatprep.subr.mxu0 %v747
    %919 = vmatpush1.msra.mxu0 %v746
    %920 = vmatprep.subr.mxu0 %v749
    %921 = vmatpush1.msra.mxu0 %v748
    %922 = vmatprep.subr.mxu0 %v751
    %923 = vmatpush1.msra.mxu0 %v750
    %924 = vmatprep.subr.mxu0 %v753
    %925 = vmatpush1.msra.mxu0 %v752
    %926 = vmatprep.subr.mxu0 %v755
    %927 = vmatpush1.msra.mxu0 %v754
    %928 = vmatprep.mubr.f32.mxu0 %v673
    %929 = vmatmul.mubr.f32.gmra.mrb[0].mxu0 %v672
    %v930 = vpop.f32.mrb[0].mxu0
    %v931 = vadd.f32 %v857, %v930
    %v932 = vpop.f32.mrb[0].mxu0
    %v933 = vadd.f32 %v861, %v932
    %934 = vdwg.mxu0
    %935 = vmatprep.subr.mxu0 %v757
    %936 = vmatpush1.msra.mxu0 %v756
    %937 = vmatprep.subr.mxu0 %v759
    %938 = vmatpush1.msra.mxu0 %v758
    %939 = vmatprep.subr.mxu0 %v761
    %940 = vmatpush1.msra.mxu0 %v760
    %941 = vmatprep.subr.mxu0 %v763
    %942 = vmatpush1.msra.mxu0 %v762
    %943 = vmatprep.subr.mxu0 %v765
    %944 = vmatpush1.msra.mxu0 %v764
    %945 = vmatprep.subr.mxu0 %v767
    %946 = vmatpush1.msra.mxu0 %v766
    %947 = vmatprep.subr.mxu0 %v769
    %948 = vmatpush1.msra.mxu0 %v768
    %949 = vmatprep.subr.mxu0 %v771
    %950 = vmatpush1.msra.mxu0 %v770
    %951 = vmatprep.subr.mxu0 %v773
    %952 = vmatpush1.msra.mxu0 %v772
    %953 = vmatprep.subr.mxu0 %v775
    %954 = vmatpush1.msra.mxu0 %v774
    %955 = vmatprep.subr.mxu0 %v777
    %956 = vmatpush1.msra.mxu0 %v776
    %957 = vmatprep.subr.mxu0 %v779
    %958 = vmatpush1.msra.mxu0 %v778
    %959 = vmatprep.subr.mxu0 %v781
    %960 = vmatpush1.msra.mxu0 %v780
    %961 = vmatprep.subr.mxu0 %v783
    %962 = vmatpush1.msra.mxu0 %v782
    %963 = vmatprep.subr.mxu0 %v785
    %964 = vmatpush1.msra.mxu0 %v784
    %965 = vmatprep.subr.mxu0 %v787
    %966 = vmatpush1.msra.mxu0 %v786
    %967 = vmatprep.subr.mxu0 %v789
    %968 = vmatpush1.msra.mxu0 %v788
    %969 = vmatprep.subr.mxu0 %v791
    %970 = vmatpush1.msra.mxu0 %v790
    %971 = vmatprep.subr.mxu0 %v793
    %972 = vmatpush1.msra.mxu0 %v792
    %973 = vmatprep.subr.mxu0 %v795
    %974 = vmatpush1.msra.mxu0 %v794
    %975 = vmatprep.subr.mxu0 %v797
    %976 = vmatpush1.msra.mxu0 %v796
    %977 = vmatprep.subr.mxu0 %v799
    %978 = vmatpush1.msra.mxu0 %v798
    %979 = vmatprep.subr.mxu0 %v801
    %980 = vmatpush1.msra.mxu0 %v800
    %981 = vmatprep.subr.mxu0 %v803
    %982 = vmatpush1.msra.mxu0 %v802
    %983 = vmatprep.subr.mxu0 %v805
    %984 = vmatpush1.msra.mxu0 %v804
    %985 = vmatprep.subr.mxu0 %v807
    %986 = vmatpush1.msra.mxu0 %v806
    %987 = vmatprep.subr.mxu0 %v809
    %988 = vmatpush1.msra.mxu0 %v808
    %989 = vmatprep.subr.mxu0 %v811
    %990 = vmatpush1.msra.mxu0 %v810
    %991 = vmatprep.subr.mxu0 %v813
    %992 = vmatpush1.msra.mxu0 %v812
    %993 = vmatprep.subr.mxu0 %v815
    %994 = vmatpush1.msra.mxu0 %v814
    %995 = vmatprep.subr.mxu0 %v817
    %996 = vmatpush1.msra.mxu0 %v816
    %997 = vmatprep.subr.mxu0 %v819
    %998 = vmatpush1.msra.mxu0 %v818
    %999 = vmatprep.mubr.f32.mxu0 %v690
    %1000 = vmatmul.mubr.f32.gmra.mrb[0].mxu0 %v689
    %v1001 = vpop.f32.mrb[0].mxu0
    %v1002 = vadd.f32 %v931, %v1001
    %v1003 = vpop.f32.mrb[0].mxu0
    %v1004 = vadd.f32 %v933, %v1003
    %1005 = vdwg.mxu0
    %1006 = vmatprep.subr.mxu0 %v821
    %1007 = vmatpush1.msra.mxu0 %v820
    %1008 = vmatprep.subr.mxu0 %v823
    %1009 = vmatpush1.msra.mxu0 %v822
    %1010 = vmatprep.subr.mxu0 %v825
    %1011 = vmatpush1.msra.mxu0 %v824
    %1012 = vmatprep.subr.mxu0 %v827
    %1013 = vmatpush1.msra.mxu0 %v826
    %1014 = vmatprep.subr.mxu0 %v829
    %1015 = vmatpush1.msra.mxu0 %v828
    %1016 = vmatprep.subr.mxu0 %v831
    %1017 = vmatpush1.msra.mxu0 %v830
    %1018 = vmatprep.subr.mxu0 %v833
    %1019 = vmatpush1.msra.mxu0 %v832
    %1020 = vmatprep.subr.mxu0 %v835
    %1021 = vmatpush1.msra.mxu0 %v834
    %1022 = vmatprep.subr.mxu0 %v837
    %1023 = vmatpush1.msra.mxu0 %v836
    %1024 = vmatprep.subr.mxu0 %v839
    %1025 = vmatpush1.msra.mxu0 %v838
    %1026 = vmatprep.subr.mxu0 %v841
    %1027 = vmatpush1.msra.mxu0 %v840
    %1028 = vmatprep.subr.mxu0 %v843
    %1029 = vmatpush1.msra.mxu0 %v842
    %1030 = vmatprep.subr.mxu0 %v845
    %1031 = vmatpush1.msra.mxu0 %v844
    %1032 = vmatprep.subr.mxu0 %v847
    %1033 = vmatpush1.msra.mxu0 %v846
    %1034 = vmatprep.subr.mxu0 %v849
    %1035 = vmatpush1.msra.mxu0 %v848
    %1036 = vmatprep.subr.mxu0 %v851
    %1037 = vmatpush1.msra.mxu0 %v850
    %1038 = vmatprep.subr.mxu0 0.0
    %1039 = vmatpush1.msra.mxu0 0.0
    %1040 = vmatprep.subr.mxu0 0.0
    %1041 = vmatpush1.msra.mxu0 0.0
    %1042 = vmatprep.subr.mxu0 0.0
    %1043 = vmatpush1.msra.mxu0 0.0
    %1044 = vmatprep.subr.mxu0 0.0
    %1045 = vmatpush1.msra.mxu0 0.0
    %1046 = vmatprep.subr.mxu0 0.0
    %1047 = vmatpush1.msra.mxu0 0.0
    %1048 = vmatprep.subr.mxu0 0.0
    %1049 = vmatpush1.msra.mxu0 0.0
    %1050 = vmatprep.subr.mxu0 0.0
    %1051 = vmatpush1.msra.mxu0 0.0
    %1052 = vmatprep.subr.mxu0 0.0
    %1053 = vmatpush1.msra.mxu0 0.0
    %1054 = vmatprep.subr.mxu0 0.0
    %1055 = vmatpush1.msra.mxu0 0.0
    %1056 = vmatprep.subr.mxu0 0.0
    %1057 = vmatpush1.msra.mxu0 0.0
    %1058 = vmatprep.subr.mxu0 0.0
    %1059 = vmatpush1.msra.mxu0 0.0
    %1060 = vmatprep.subr.mxu0 0.0
    %1061 = vmatpush1.msra.mxu0 0.0
    %1062 = vmatprep.subr.mxu0 0.0
    %1063 = vmatpush1.msra.mxu0 0.0
    %1064 = vmatprep.subr.mxu0 0.0
    %1065 = vmatpush1.msra.mxu0 0.0
    %1066 = vmatprep.subr.mxu0 0.0
    %1067 = vmatpush1.msra.mxu0 0.0
    %1068 = vmatprep.subr.mxu0 0.0
    %1069 = vmatpush1.msra.mxu0 0.0
    %1070 = vmatprep.mubr.f32.mxu0 0.0
    %1071 = vmatmul.mubr.f32.gmra.mrb[0].mxu0 %v691
    %v1072 = vpop.f32.mrb[0].mxu0
    %v1073 = vadd.f32 %v1002, %v1072
    %v1074 = vpop.f32.mrb[0].mxu0
    %v1075 = vadd.f32 %v1004, %v1074
    %1076 = vdwg.mxu0
    %v1077 = vmax.f32 %v1073, 0.0
    %v1078 = vmax.f32 %v1075, 0.0
    %v1079 = vld [vmem:[%s10] sm:$0xff]
    %v1080 = vld [vmem:[%s10 + $0x8] sm:$0xff]
    %v1081 = vld [vmem:[%s10 + $0x10] sm:$0xff]
    %v1082 = vld [vmem:[%s10 + $0x18] sm:$0xff]
    %v1083 = vld [vmem:[%s10 + $0x20] sm:$0xff]
    %v1084 = vld [vmem:[%s10 + $0x28] sm:$0xff]
    %v1085 = vld [vmem:[%s10 + $0x30] sm:$0xff]
    %v1086 = vld [vmem:[%s10 + $0x38] sm:$0xff]
    %v1087 = vld [vmem:[%s10 + $0x40] sm:$0xff]
    %v1088 = vld [vmem:[%s10 + $0x48] sm:$0xff]
    %v1089 = vld [vmem:[%s10 + $0x50] sm:$0xff]
    %v1090 = vld [vmem:[%s10 + $0x58] sm:$0xff]
    %v1091 = vld [vmem:[%s10 + $0x60] sm:$0xff]
    %v1092 = vld [vmem:[%s10 + $0x68] sm:$0xff]
    %v1093 = vld [vmem:[%s10 + $0x70] sm:$0xff]
    %v1094 = vld [vmem:[%s10 + $0x78] sm:$0xff]
    %v1095 = vld [vmem:[%s10 + $0x80] sm:$0xff]
    %v1096 = vld [vmem:[%s10 + $0x88] sm:$0xff]
    %v1097 = vld [vmem:[%s10 + $0x90] sm:$0xff]
    %v1098 = vld [vmem:[%s10 + $0x98] sm:$0xff]
    %v1099 = vld [vmem:[%s10 + $0xa0] sm:$0xff]
    %v1100 = vld [vmem:[%s10 + $0xa8] sm:$0xff]
    %v1101 = vld [vmem:[%s10 + $0xb0] sm:$0xff]
    %v1102 = vld [vmem:[%s10 + $0xb8] sm:$0xff]
    %v1103 = vld [vmem:[%s10 + $0xc0] sm:$0xff]
    %v1104 = vld [vmem:[%s10 + $0xc8] sm:$0xff]
    %v1105 = vld [vmem:[%s10 + $0xd0] sm:$0xff]
    %v1106 = vld [vmem:[%s10 + $0xd8] sm:$0xff]
    %v1107 = vld [vmem:[%s10 + $0xe0] sm:$0xff]
    %v1108 = vld [vmem:[%s10 + $0xe8] sm:$0xff]
    %v1109 = vld [vmem:[%s10 + $0xf0] sm:$0xff]
    %v1110 = vld [vmem:[%s10 + $0xf8] sm:$0xff]
    %v1111 = vld [vmem:[%s11] sm:$0x1]
    %v1113 = vlaneseq
    %v1114 = vshrl.u32 %v1113, 7
    %v1115 = vsub.s32 0, %v1114
    %v1116 = vrot.slane %v1111, %v1115
    %1118 = vmatprep.subr.mxu0 0.0
    %1119 = vmatpush1.msra.mxu0 %v1079
    %1120 = vmatprep.subr.mxu0 0.0
    %1121 = vmatpush1.msra.mxu0 %v1080
    %1122 = vmatprep.subr.mxu0 0.0
    %1123 = vmatpush1.msra.mxu0 %v1081
    %1124 = vmatprep.subr.mxu0 0.0
    %1125 = vmatpush1.msra.mxu0 %v1082
    %1126 = vmatprep.subr.mxu0 0.0
    %1127 = vmatpush1.msra.mxu0 %v1083
    %1128 = vmatprep.subr.mxu0 0.0
    %1129 = vmatpush1.msra.mxu0 %v1084
    %1130 = vmatprep.subr.mxu0 0.0
    %1131 = vmatpush1.msra.mxu0 %v1085
    %1132 = vmatprep.subr.mxu0 0.0
    %1133 = vmatpush1.msra.mxu0 %v1086
    %1134 = vmatprep.subr.mxu0 0.0
    %1135 = vmatpush1.msra.mxu0 %v1087
    %1136 = vmatprep.subr.mxu0 0.0
    %1137 = vmatpush1.msra.mxu0 %v1088
    %1138 = vmatprep.subr.mxu0 0.0
    %1139 = vmatpush1.msra.mxu0 %v1089
    %1140 = vmatprep.subr.mxu0 0.0
    %1141 = vmatpush1.msra.mxu0 %v1090
    %1142 = vmatprep.subr.mxu0 0.0
    %1143 = vmatpush1.msra.mxu0 %v1091
    %1144 = vmatprep.subr.mxu0 0.0
    %1145 = vmatpush1.msra.mxu0 %v1092
    %1146 = vmatprep.subr.mxu0 0.0
    %1147 = vmatpush1.msra.mxu0 %v1093
    %1148 = vmatprep.subr.mxu0 0.0
    %1149 = vmatpush1.msra.mxu0 %v1094
    %1150 = vmatprep.subr.mxu0 0.0
    %1151 = vmatpush1.msra.mxu0 %v1095
    %1152 = vmatprep.subr.mxu0 0.0
    %1153 = vmatpush1.msra.mxu0 %v1096
    %1154 = vmatprep.subr.mxu0 0.0
    %1155 = vmatpush1.msra.mxu0 %v1097
    %1156 = vmatprep.subr.mxu0 0.0
    %1157 = vmatpush1.msra.mxu0 %v1098
    %1158 = vmatprep.subr.mxu0 0.0
    %1159 = vmatpush1.msra.mxu0 %v1099
    %1160 = vmatprep.subr.mxu0 0.0
    %1161 = vmatpush1.msra.mxu0 %v1100
    %1162 = vmatprep.subr.mxu0 0.0
    %1163 = vmatpush1.msra.mxu0 %v1101
    %1164 = vmatprep.subr.mxu0 0.0
    %1165 = vmatpush1.msra.mxu0 %v1102
    %1166 = vmatprep.subr.mxu0 0.0
    %1167 = vmatpush1.msra.mxu0 %v1103
    %1168 = vmatprep.subr.mxu0 0.0
    %1169 = vmatpush1.msra.mxu0 %v1104
    %1170 = vmatprep.subr.mxu0 0.0
    %1171 = vmatpush1.msra.mxu0 %v1105
    %1172 = vmatprep.subr.mxu0 0.0
    %1173 = vmatpush1.msra.mxu0 %v1106
    %1174 = vmatprep.subr.mxu0 0.0
    %1175 = vmatpush1.msra.mxu0 %v1107
    %1176 = vmatprep.subr.mxu0 0.0
    %1177 = vmatpush1.msra.mxu0 %v1108
    %1178 = vmatprep.subr.mxu0 0.0
    %1179 = vmatpush1.msra.mxu0 %v1109
    %1180 = vmatprep.subr.mxu0 0.0
    %1181 = vmatpush1.msra.mxu0 %v1110
    %1182 = vmatprep.mubr.f32.mxu0 %v185
    %1183 = vmatmul.mubr.f32.gmra.mrb[0].mxu0 %v184
    %v1184 = vpop.f32.mrb[0].mxu0
    %v1185 = vadd.f32 %v1116, %v1184
    %v1186 = vpop.f32.mrb[0].mxu0
    %1187 = vmatprep.mubr.f32.mxu0 %v187
    %1188 = vmatmul.mubr.f32.gmra.mrb[0].mxu0 %v186
    %v1189 = vpop.f32.mrb[0].mxu0
    %v1190 = vadd.f32 %v1116, %v1189
    %v1191 = vpop.f32.mrb[0].mxu0
    %1192 = vdwg.mxu0
    %v1193 = vmax.f32 %v1185, 0.0
    %v1194 = vmax.f32 %v1190, 0.0
    %1195 = vmatprep.subr.mxu0 0.0
    %1196 = vmatpush1.msra.mxu0 %v1193
    %1197 = vmatprep.subr.mxu0 0.0
    %1198 = vmatpush1.msra.mxu0 %v1194
    %1199 = vmatprep.subr.mxu0 0.0
    %1200 = vmatpush1.msra.mxu0 0.0
    %1201 = vmatprep.subr.mxu0 0.0
    %1202 = vmatpush1.msra.mxu0 0.0
    %1203 = vmatprep.subr.mxu0 0.0
    %1204 = vmatpush1.msra.mxu0 0.0
    %1205 = vmatprep.subr.mxu0 0.0
    %1206 = vmatpush1.msra.mxu0 0.0
    %1207 = vmatprep.subr.mxu0 0.0
    %1208 = vmatpush1.msra.mxu0 0.0
    %1209 = vmatprep.subr.mxu0 0.0
    %1210 = vmatpush1.msra.mxu0 0.0
    %1211 = vmatprep.subr.mxu0 0.0
    %1212 = vmatpush1.msra.mxu0 0.0
    %1213 = vmatprep.subr.mxu0 0.0
    %1214 = vmatpush1.msra.mxu0 0.0
    %1215 = vmatprep.subr.mxu0 0.0
    %1216 = vmatpush1.msra.mxu0 0.0
    %1217 = vmatprep.subr.mxu0 0.0
    %1218 = vmatpush1.msra.mxu0 0.0
    %1219 = vmatprep.subr.mxu0 0.0
    %1220 = vmatpush1.msra.mxu0 0.0
    %1221 = vmatprep.subr.mxu0 0.0
    %1222 = vmatpush1.msra.mxu0 0.0
    %1223 = vmatprep.subr.mxu0 0.0
    %1224 = vmatpush1.msra.mxu0 0.0
    %1225 = vmatprep.subr.mxu0 0.0
    %1226 = vmatpush1.msra.mxu0 0.0
    %1227 = vmatprep.subr.mxu0 0.0
    %1228 = vmatpush1.msra.mxu0 0.0
    %1229 = vmatprep.subr.mxu0 0.0
    %1230 = vmatpush1.msra.mxu0 0.0
    %1231 = vmatprep.subr.mxu0 0.0
    %1232 = vmatpush1.msra.mxu0 0.0
    %1233 = vmatprep.subr.mxu0 0.0
    %1234 = vmatpush1.msra.mxu0 0.0
    %1235 = vmatprep.subr.mxu0 0.0
    %1236 = vmatpush1.msra.mxu0 0.0
    %1237 = vmatprep.subr.mxu0 0.0
    %1238 = vmatpush1.msra.mxu0 0.0
    %1239 = vmatprep.subr.mxu0 0.0
    %1240 = vmatpush1.msra.mxu0 0.0
    %1241 = vmatprep.subr.mxu0 0.0
    %1242 = vmatpush1.msra.mxu0 0.0
    %1243 = vmatprep.subr.mxu0 0.0
    %1244 = vmatpush1.msra.mxu0 0.0
    %1245 = vmatprep.subr.mxu0 0.0
    %1246 = vmatpush1.msra.mxu0 0.0
    %1247 = vmatprep.subr.mxu0 0.0
    %1248 = vmatpush1.msra.mxu0 0.0
    %1249 = vmatprep.subr.mxu0 0.0
    %1250 = vmatpush1.msra.mxu0 0.0
    %1251 = vmatprep.subr.mxu0 0.0
    %1252 = vmatpush1.msra.mxu0 0.0
    %1253 = vmatprep.subr.mxu0 0.0
    %1254 = vmatpush1.msra.mxu0 0.0
    %1255 = vmatprep.subr.mxu0 0.0
    %1256 = vmatpush1.msra.mxu0 0.0
    %1257 = vmatprep.subr.mxu0 0.0
    %1258 = vmatpush1.msra.mxu0 0.0
    %1259 = vmatprep.mubr.f32.mxu0 0.0
    %1260 = vmatmul.mubr.f32.gmra.mrb[0].mxu0 %v190
    %v1261 = vpop.f32.mrb[0].mxu0
    %v1262 = vadd.f32 0.0, %v1261
    %v1263 = vpop.f32.mrb[0].mxu0
    %1264 = vmatprep.mubr.f32.mxu0 0.0
    %1265 = vmatmul.mubr.f32.gmra.mrb[0].mxu0 %v193
    %v1266 = vpop.f32.mrb[0].mxu0
    %v1267 = vadd.f32 0.0, %v1266
    %v1268 = vpop.f32.mrb[0].mxu0
    %1269 = vdwg.mxu0
    %v1270 = vld [vmem:[%s12] sm:$0xff]
    %v1271 = vld [vmem:[%s12 + $0x8] sm:$0xff]
    %v1272 = vld [vmem:[%s12 + $0x10] sm:$0xff]
    %v1273 = vld [vmem:[%s12 + $0x18] sm:$0xff]
    %v1274 = vld [vmem:[%s12 + $0x20] sm:$0xff]
    %v1275 = vld [vmem:[%s12 + $0x28] sm:$0xff]
    %v1276 = vld [vmem:[%s12 + $0x30] sm:$0xff]
    %v1277 = vld [vmem:[%s12 + $0x38] sm:$0xff]
    %v1278 = vld [vmem:[%s12 + $0x40] sm:$0xff]
    %v1279 = vld [vmem:[%s12 + $0x48] sm:$0xff]
    %v1280 = vld [vmem:[%s12 + $0x50] sm:$0xff]
    %v1281 = vld [vmem:[%s12 + $0x58] sm:$0xff]
    %v1282 = vld [vmem:[%s12 + $0x60] sm:$0xff]
    %v1283 = vld [vmem:[%s12 + $0x68] sm:$0xff]
    %v1284 = vld [vmem:[%s12 + $0x70] sm:$0xff]
    %v1285 = vld [vmem:[%s12 + $0x78] sm:$0xff]
    %v1286 = vld [vmem:[%s12 + $0x80] sm:$0xff]
    %v1287 = vld [vmem:[%s12 + $0x88] sm:$0xff]
    %v1288 = vld [vmem:[%s12 + $0x90] sm:$0xff]
    %v1289 = vld [vmem:[%s12 + $0x98] sm:$0xff]
    %v1290 = vld [vmem:[%s12 + $0xa0] sm:$0xff]
    %v1291 = vld [vmem:[%s12 + $0xa8] sm:$0xff]
    %v1292 = vld [vmem:[%s12 + $0xb0] sm:$0xff]
    %v1293 = vld [vmem:[%s12 + $0xb8] sm:$0xff]
    %v1294 = vld [vmem:[%s12 + $0xc0] sm:$0xff]
    %v1295 = vld [vmem:[%s12 + $0xc8] sm:$0xff]
    %v1296 = vld [vmem:[%s12 + $0xd0] sm:$0xff]
    %v1297 = vld [vmem:[%s12 + $0xd8] sm:$0xff]
    %v1298 = vld [vmem:[%s12 + $0xe0] sm:$0xff]
    %v1299 = vld [vmem:[%s12 + $0xe8] sm:$0xff]
    %v1300 = vld [vmem:[%s12 + $0xf0] sm:$0xff]
    %v1301 = vld [vmem:[%s12 + $0xf8] sm:$0xff]
    %v1302 = vld [vmem:[%s12 + $0x100] sm:$0xff]
    %v1303 = vld [vmem:[%s12 + $0x108] sm:$0xff]
    %v1304 = vld [vmem:[%s12 + $0x110] sm:$0xff]
    %v1305 = vld [vmem:[%s12 + $0x118] sm:$0xff]
    %v1306 = vld [vmem:[%s12 + $0x120] sm:$0xff]
    %v1307 = vld [vmem:[%s12 + $0x128] sm:$0xff]
    %v1308 = vld [vmem:[%s12 + $0x130] sm:$0xff]
    %v1309 = vld [vmem:[%s12 + $0x138] sm:$0xff]
    %v1310 = vld [vmem:[%s12 + $0x140] sm:$0xff]
    %v1311 = vld [vmem:[%s12 + $0x148] sm:$0xff]
    %v1312 = vld [vmem:[%s12 + $0x150] sm:$0xff]
    %v1313 = vld [vmem:[%s12 + $0x158] sm:$0xff]
    %v1314 = vld [vmem:[%s12 + $0x160] sm:$0xff]
    %v1315 = vld [vmem:[%s12 + $0x168] sm:$0xff]
    %v1316 = vld [vmem:[%s12 + $0x170] sm:$0xff]
    %v1317 = vld [vmem:[%s12 + $0x178] sm:$0xff]
    %v1318 = vld [vmem:[%s12 + $0x180] sm:$0xff]
    %v1319 = vld [vmem:[%s12 + $0x188] sm:$0xff]
    %v1320 = vld [vmem:[%s12 + $0x190] sm:$0xff]
    %v1321 = vld [vmem:[%s12 + $0x198] sm:$0xff]
    %v1322 = vld [vmem:[%s12 + $0x1a0] sm:$0xff]
    %v1323 = vld [vmem:[%s12 + $0x1a8] sm:$0xff]
    %v1324 = vld [vmem:[%s12 + $0x1b0] sm:$0xff]
    %v1325 = vld [vmem:[%s12 + $0x1b8] sm:$0xff]
    %v1326 = vld [vmem:[%s12 + $0x1c0] sm:$0xff]
    %v1327 = vld [vmem:[%s12 + $0x1c8] sm:$0xff]
    %v1328 = vld [vmem:[%s12 + $0x1d0] sm:$0xff]
    %v1329 = vld [vmem:[%s12 + $0x1d8] sm:$0xff]
    %v1330 = vld [vmem:[%s12 + $0x1e0] sm:$0xff]
    %v1331 = vld [vmem:[%s12 + $0x1e8] sm:$0xff]
    %v1332 = vld [vmem:[%s12 + $0x1f0] sm:$0xff]
    %v1333 = vld [vmem:[%s12 + $0x1f8] sm:$0xff]
    %v1334 = vld [vmem:[%s13] sm:$0x1]
    %v1336 = vlaneseq
    %v1337 = vshrl.u32 %v1336, 7
    %v1338 = vsub.s32 0, %v1337
    %v1339 = vrot.slane %v1334, %v1338
    %1341 = vmatprep.subr.mxu0 0.0
    %1342 = vmatpush1.msra.mxu0 %v1270
    %1343 = vmatprep.subr.mxu0 0.0
    %1344 = vmatpush1.msra.mxu0 %v1271
    %1345 = vmatprep.subr.mxu0 0.0
    %1346 = vmatpush1.msra.mxu0 %v1272
    %1347 = vmatprep.subr.mxu0 0.0
    %1348 = vmatpush1.msra.mxu0 %v1273
    %1349 = vmatprep.subr.mxu0 0.0
    %1350 = vmatpush1.msra.mxu0 %v1274
    %1351 = vmatprep.subr.mxu0 0.0
    %1352 = vmatpush1.msra.mxu0 %v1275
    %1353 = vmatprep.subr.mxu0 0.0
    %1354 = vmatpush1.msra.mxu0 %v1276
    %1355 = vmatprep.subr.mxu0 0.0
    %1356 = vmatpush1.msra.mxu0 %v1277
    %1357 = vmatprep.subr.mxu0 0.0
    %1358 = vmatpush1.msra.mxu0 %v1278
    %1359 = vmatprep.subr.mxu0 0.0
    %1360 = vmatpush1.msra.mxu0 %v1279
    %1361 = vmatprep.subr.mxu0 0.0
    %1362 = vmatpush1.msra.mxu0 %v1280
    %1363 = vmatprep.subr.mxu0 0.0
    %1364 = vmatpush1.msra.mxu0 %v1281
    %1365 = vmatprep.subr.mxu0 0.0
    %1366 = vmatpush1.msra.mxu0 %v1282
    %1367 = vmatprep.subr.mxu0 0.0
    %1368 = vmatpush1.msra.mxu0 %v1283
    %1369 = vmatprep.subr.mxu0 0.0
    %1370 = vmatpush1.msra.mxu0 %v1284
    %1371 = vmatprep.subr.mxu0 0.0
    %1372 = vmatpush1.msra.mxu0 %v1285
    %1373 = vmatprep.subr.mxu0 0.0
    %1374 = vmatpush1.msra.mxu0 %v1286
    %1375 = vmatprep.subr.mxu0 0.0
    %1376 = vmatpush1.msra.mxu0 %v1287
    %1377 = vmatprep.subr.mxu0 0.0
    %1378 = vmatpush1.msra.mxu0 %v1288
    %1379 = vmatprep.subr.mxu0 0.0
    %1380 = vmatpush1.msra.mxu0 %v1289
    %1381 = vmatprep.subr.mxu0 0.0
    %1382 = vmatpush1.msra.mxu0 %v1290
    %1383 = vmatprep.subr.mxu0 0.0
    %1384 = vmatpush1.msra.mxu0 %v1291
    %1385 = vmatprep.subr.mxu0 0.0
    %1386 = vmatpush1.msra.mxu0 %v1292
    %1387 = vmatprep.subr.mxu0 0.0
    %1388 = vmatpush1.msra.mxu0 %v1293
    %1389 = vmatprep.subr.mxu0 0.0
    %1390 = vmatpush1.msra.mxu0 %v1294
    %1391 = vmatprep.subr.mxu0 0.0
    %1392 = vmatpush1.msra.mxu0 %v1295
    %1393 = vmatprep.subr.mxu0 0.0
    %1394 = vmatpush1.msra.mxu0 %v1296
    %1395 = vmatprep.subr.mxu0 0.0
    %1396 = vmatpush1.msra.mxu0 %v1297
    %1397 = vmatprep.subr.mxu0 0.0
    %1398 = vmatpush1.msra.mxu0 %v1298
    %1399 = vmatprep.subr.mxu0 0.0
    %1400 = vmatpush1.msra.mxu0 %v1299
    %1401 = vmatprep.subr.mxu0 0.0
    %1402 = vmatpush1.msra.mxu0 %v1300
    %1403 = vmatprep.subr.mxu0 0.0
    %1404 = vmatpush1.msra.mxu0 %v1301
    %1405 = vmatprep.mubr.f32.mxu0 %v1267
    %1406 = vmatmul.mubr.f32.gmra.mrb[0].mxu0 %v1262
    %v1407 = vpop.f32.mrb[0].mxu0
    %v1408 = vadd.f32 %v1339, %v1407
    %v1409 = vpop.f32.mrb[0].mxu0
    %1410 = vdwg.mxu0
    %1411 = vmatprep.subr.mxu0 0.0
    %1412 = vmatpush1.msra.mxu0 %v1302
    %1413 = vmatprep.subr.mxu0 0.0
    %1414 = vmatpush1.msra.mxu0 %v1303
    %1415 = vmatprep.subr.mxu0 0.0
    %1416 = vmatpush1.msra.mxu0 %v1304
    %1417 = vmatprep.subr.mxu0 0.0
    %1418 = vmatpush1.msra.mxu0 %v1305
    %1419 = vmatprep.subr.mxu0 0.0
    %1420 = vmatpush1.msra.mxu0 %v1306
    %1421 = vmatprep.subr.mxu0 0.0
    %1422 = vmatpush1.msra.mxu0 %v1307
    %1423 = vmatprep.subr.mxu0 0.0
    %1424 = vmatpush1.msra.mxu0 %v1308
    %1425 = vmatprep.subr.mxu0 0.0
    %1426 = vmatpush1.msra.mxu0 %v1309
    %1427 = vmatprep.subr.mxu0 0.0
    %1428 = vmatpush1.msra.mxu0 %v1310
    %1429 = vmatprep.subr.mxu0 0.0
    %1430 = vmatpush1.msra.mxu0 %v1311
    %1431 = vmatprep.subr.mxu0 0.0
    %1432 = vmatpush1.msra.mxu0 %v1312
    %1433 = vmatprep.subr.mxu0 0.0
    %1434 = vmatpush1.msra.mxu0 %v1313
    %1435 = vmatprep.subr.mxu0 0.0
    %1436 = vmatpush1.msra.mxu0 %v1314
    %1437 = vmatprep.subr.mxu0 0.0
    %1438 = vmatpush1.msra.mxu0 %v1315
    %1439 = vmatprep.subr.mxu0 0.0
    %1440 = vmatpush1.msra.mxu0 %v1316
    %1441 = vmatprep.subr.mxu0 0.0
    %1442 = vmatpush1.msra.mxu0 %v1317
    %1443 = vmatprep.subr.mxu0 0.0
    %1444 = vmatpush1.msra.mxu0 %v1318
    %1445 = vmatprep.subr.mxu0 0.0
    %1446 = vmatpush1.msra.mxu0 %v1319
    %1447 = vmatprep.subr.mxu0 0.0
    %1448 = vmatpush1.msra.mxu0 %v1320
    %1449 = vmatprep.subr.mxu0 0.0
    %1450 = vmatpush1.msra.mxu0 %v1321
    %1451 = vmatprep.subr.mxu0 0.0
    %1452 = vmatpush1.msra.mxu0 %v1322
    %1453 = vmatprep.subr.mxu0 0.0
    %1454 = vmatpush1.msra.mxu0 %v1323
    %1455 = vmatprep.subr.mxu0 0.0
    %1456 = vmatpush1.msra.mxu0 %v1324
    %1457 = vmatprep.subr.mxu0 0.0
    %1458 = vmatpush1.msra.mxu0 %v1325
    %1459 = vmatprep.subr.mxu0 0.0
    %1460 = vmatpush1.msra.mxu0 %v1326
    %1461 = vmatprep.subr.mxu0 0.0
    %1462 = vmatpush1.msra.mxu0 %v1327
    %1463 = vmatprep.subr.mxu0 0.0
    %1464 = vmatpush1.msra.mxu0 %v1328
    %1465 = vmatprep.subr.mxu0 0.0
    %1466 = vmatpush1.msra.mxu0 %v1329
    %1467 = vmatprep.subr.mxu0 0.0
    %1468 = vmatpush1.msra.mxu0 %v1330
    %1469 = vmatprep.subr.mxu0 0.0
    %1470 = vmatpush1.msra.mxu0 %v1331
    %1471 = vmatprep.subr.mxu0 0.0
    %1472 = vmatpush1.msra.mxu0 %v1332
    %1473 = vmatprep.subr.mxu0 0.0
    %1474 = vmatpush1.msra.mxu0 %v1333
    %1475 = vmatprep.mubr.f32.mxu0 %v658
    %1476 = vmatmul.mubr.f32.gmra.mrb[0].mxu0 %v657
    %v1477 = vpop.f32.mrb[0].mxu0
    %v1478 = vadd.f32 %v1408, %v1477
    %v1479 = vpop.f32.mrb[0].mxu0
    %1480 = vdwg.mxu0
    %v1481 = vmax.f32 %v1478, 0.0
    %v1482 = vrot.slane %v1481, 4
    %v1483 = vadd.f32 %v1481, %v1482
    %v1484 = vrot.slane %v1483, 2
    %v1485 = vadd.f32 %v1483, %v1484
    %v1486 = vrot.slane %v1485, 1
    %v1487 = vadd.f32 %v1485, %v1486
    %v1488 = vmul.f32 %v1487, %v671
    %v1489 = vadd.f32 %v1193, %v1194
    %v1490 = vrot.slane %v1489, 4
    %v1491 = vadd.f32 %v1489, %v1490
    %v1492 = vrot.slane %v1491, 2
    %v1493 = vadd.f32 %v1491, %v1492
    %v1494 = vrot.slane %v1493, 1
    %v1495 = vadd.f32 %v1493, %v1494
    %v1496 = vmul.f32 %v1495, %v688
    %v1497 = vld [vmem:[%s14] sm:$0xff]
    %v1498 = vld [vmem:[%s14 + $0x8] sm:$0xff]
    %v1499 = vld [vmem:[%s14 + $0x10] sm:$0xff]
    %v1500 = vld [vmem:[%s14 + $0x18] sm:$0xff]
    %v1501 = vld [vmem:[%s14 + $0x20] sm:$0xff]
    %v1502 = vld [vmem:[%s14 + $0x28] sm:$0xff]
    %v1503 = vld [vmem:[%s14 + $0x30] sm:$0xff]
    %v1504 = vld [vmem:[%s14 + $0x38] sm:$0xff]
    %v1505 = vld [vmem:[%s14 + $0x40] sm:$0xff]
    %v1506 = vld [vmem:[%s14 + $0x48] sm:$0xff]
    %v1507 = vld [vmem:[%s14 + $0x50] sm:$0xff]
    %v1508 = vld [vmem:[%s14 + $0x58] sm:$0xff]
    %v1509 = vld [vmem:[%s14 + $0x60] sm:$0xff]
    %v1510 = vld [vmem:[%s14 + $0x68] sm:$0xff]
    %v1511 = vld [vmem:[%s14 + $0x70] sm:$0xff]
    %v1512 = vld [vmem:[%s14 + $0x78] sm:$0xff]
    %v1513 = vld [vmem:[%s14 + $0x80] sm:$0xff]
    %v1514 = vld [vmem:[%s14 + $0x88] sm:$0xff]
    %v1515 = vld [vmem:[%s14 + $0x90] sm:$0xff]
    %v1516 = vld [vmem:[%s14 + $0x98] sm:$0xff]
    %v1517 = vld [vmem:[%s14 + $0xa0] sm:$0xff]
    %v1518 = vld [vmem:[%s14 + $0xa8] sm:$0xff]
    %v1519 = vld [vmem:[%s14 + $0xb0] sm:$0xff]
    %v1520 = vld [vmem:[%s14 + $0xb8] sm:$0xff]
    %v1521 = vld [vmem:[%s14 + $0xc0] sm:$0xff]
    %v1522 = vld [vmem:[%s14 + $0xc8] sm:$0xff]
    %v1523 = vld [vmem:[%s14 + $0xd0] sm:$0xff]
    %v1524 = vld [vmem:[%s14 + $0xd8] sm:$0xff]
    %v1525 = vld [vmem:[%s14 + $0xe0] sm:$0xff]
    %v1526 = vld [vmem:[%s14 + $0xe8] sm:$0xff]
    %v1527 = vld [vmem:[%s14 + $0xf0] sm:$0xff]
    %v1528 = vld [vmem:[%s14 + $0xf8] sm:$0xff]
    %v1529 = vld [vmem:[%s14 + $0x100] sm:$0xff]
    %v1530 = vld [vmem:[%s14 + $0x108] sm:$0xff]
    %v1531 = vld [vmem:[%s14 + $0x110] sm:$0xff]
    %v1532 = vld [vmem:[%s14 + $0x118] sm:$0xff]
    %v1533 = vld [vmem:[%s14 + $0x120] sm:$0xff]
    %v1534 = vld [vmem:[%s14 + $0x128] sm:$0xff]
    %v1535 = vld [vmem:[%s14 + $0x130] sm:$0xff]
    %v1536 = vld [vmem:[%s14 + $0x138] sm:$0xff]
    %v1537 = vld [vmem:[%s14 + $0x140] sm:$0xff]
    %v1538 = vld [vmem:[%s14 + $0x148] sm:$0xff]
    %v1539 = vld [vmem:[%s14 + $0x150] sm:$0xff]
    %v1540 = vld [vmem:[%s14 + $0x158] sm:$0xff]
    %v1541 = vld [vmem:[%s14 + $0x160] sm:$0xff]
    %v1542 = vld [vmem:[%s14 + $0x168] sm:$0xff]
    %v1543 = vld [vmem:[%s14 + $0x170] sm:$0xff]
    %v1544 = vld [vmem:[%s14 + $0x178] sm:$0xff]
    %v1545 = vld [vmem:[%s14 + $0x180] sm:$0xff]
    %v1546 = vld [vmem:[%s14 + $0x188] sm:$0xff]
    %v1547 = vld [vmem:[%s14 + $0x190] sm:$0xff]
    %v1548 = vld [vmem:[%s14 + $0x198] sm:$0xff]
    %v1549 = vld [vmem:[%s14 + $0x1a0] sm:$0xff]
    %v1550 = vld [vmem:[%s14 + $0x1a8] sm:$0xff]
    %v1551 = vld [vmem:[%s14 + $0x1b0] sm:$0xff]
    %v1552 = vld [vmem:[%s14 + $0x1b8] sm:$0xff]
    %v1553 = vld [vmem:[%s14 + $0x1c0] sm:$0xff]
    %v1554 = vld [vmem:[%s14 + $0x1c8] sm:$0xff]
    %v1555 = vld [vmem:[%s14 + $0x1d0] sm:$0xff]
    %v1556 = vld [vmem:[%s14 + $0x1d8] sm:$0xff]
    %v1557 = vld [vmem:[%s14 + $0x1e0] sm:$0xff]
    %v1558 = vld [vmem:[%s14 + $0x1e8] sm:$0xff]
    %v1559 = vld [vmem:[%s14 + $0x1f0] sm:$0xff]
    %v1560 = vld [vmem:[%s14 + $0x1f8] sm:$0xff]
    %v1561 = vld [vmem:[%s15] sm:$0x1]
    %1562 = vmatprep.subr.mxu0 0.0
    %1563 = vmatpush1.msra.mxu0 %v1497
    %1564 = vmatprep.subr.mxu0 0.0
    %1565 = vmatpush1.msra.mxu0 %v1498
    %1566 = vmatprep.subr.mxu0 0.0
    %1567 = vmatpush1.msra.mxu0 %v1499
    %1568 = vmatprep.subr.mxu0 0.0
    %1569 = vmatpush1.msra.mxu0 %v1500
    %1570 = vmatprep.subr.mxu0 0.0
    %1571 = vmatpush1.msra.mxu0 %v1501
    %1572 = vmatprep.subr.mxu0 0.0
    %1573 = vmatpush1.msra.mxu0 %v1502
    %1574 = vmatprep.subr.mxu0 0.0
    %1575 = vmatpush1.msra.mxu0 %v1503
    %1576 = vmatprep.subr.mxu0 0.0
    %1577 = vmatpush1.msra.mxu0 %v1504
    %1578 = vmatprep.subr.mxu0 0.0
    %1579 = vmatpush1.msra.mxu0 %v1505
    %1580 = vmatprep.subr.mxu0 0.0
    %1581 = vmatpush1.msra.mxu0 %v1506
    %1582 = vmatprep.subr.mxu0 0.0
    %1583 = vmatpush1.msra.mxu0 %v1507
    %1584 = vmatprep.subr.mxu0 0.0
    %1585 = vmatpush1.msra.mxu0 %v1508
    %1586 = vmatprep.subr.mxu0 0.0
    %1587 = vmatpush1.msra.mxu0 %v1509
    %1588 = vmatprep.subr.mxu0 0.0
    %1589 = vmatpush1.msra.mxu0 %v1510
    %1590 = vmatprep.subr.mxu0 0.0
    %1591 = vmatpush1.msra.mxu0 %v1511
    %1592 = vmatprep.subr.mxu0 0.0
    %1593 = vmatpush1.msra.mxu0 %v1512
    %1594 = vmatprep.subr.mxu0 0.0
    %1595 = vmatpush1.msra.mxu0 %v1513
    %1596 = vmatprep.subr.mxu0 0.0
    %1597 = vmatpush1.msra.mxu0 %v1514
    %1598 = vmatprep.subr.mxu0 0.0
    %1599 = vmatpush1.msra.mxu0 %v1515
    %1600 = vmatprep.subr.mxu0 0.0
    %1601 = vmatpush1.msra.mxu0 %v1516
    %1602 = vmatprep.subr.mxu0 0.0
    %1603 = vmatpush1.msra.mxu0 %v1517
    %1604 = vmatprep.subr.mxu0 0.0
    %1605 = vmatpush1.msra.mxu0 %v1518
    %1606 = vmatprep.subr.mxu0 0.0
    %1607 = vmatpush1.msra.mxu0 %v1519
    %1608 = vmatprep.subr.mxu0 0.0
    %1609 = vmatpush1.msra.mxu0 %v1520
    %1610 = vmatprep.subr.mxu0 0.0
    %1611 = vmatpush1.msra.mxu0 %v1521
    %1612 = vmatprep.subr.mxu0 0.0
    %1613 = vmatpush1.msra.mxu0 %v1522
    %1614 = vmatprep.subr.mxu0 0.0
    %1615 = vmatpush1.msra.mxu0 %v1523
    %1616 = vmatprep.subr.mxu0 0.0
    %1617 = vmatpush1.msra.mxu0 %v1524
    %1618 = vmatprep.subr.mxu0 0.0
    %1619 = vmatpush1.msra.mxu0 %v1525
    %1620 = vmatprep.subr.mxu0 0.0
    %1621 = vmatpush1.msra.mxu0 %v1526
    %1622 = vmatprep.subr.mxu0 0.0
    %1623 = vmatpush1.msra.mxu0 %v1527
    %1624 = vmatprep.subr.mxu0 0.0
    %1625 = vmatpush1.msra.mxu0 %v1528
    %1626 = vmatprep.mubr.f32.mxu0 %v1496
    %1627 = vmatmul.mubr.f32.gmra.mrb[0].mxu0 %v1488
    %v1628 = vpop.f32.mrb[0].mxu0
    %v1629 = vadd.f32 %v1561, %v1628
    %v1630 = vpop.f32.mrb[0].mxu0
    %1631 = vdwg.mxu0
    %1632 = vmatprep.subr.mxu0 0.0
    %1633 = vmatpush1.msra.mxu0 %v1529
    %1634 = vmatprep.subr.mxu0 0.0
    %1635 = vmatpush1.msra.mxu0 %v1530
    %1636 = vmatprep.subr.mxu0 0.0
    %1637 = vmatpush1.msra.mxu0 %v1531
    %1638 = vmatprep.subr.mxu0 0.0
    %1639 = vmatpush1.msra.mxu0 %v1532
    %1640 = vmatprep.subr.mxu0 0.0
    %1641 = vmatpush1.msra.mxu0 %v1533
    %1642 = vmatprep.subr.mxu0 0.0
    %1643 = vmatpush1.msra.mxu0 %v1534
    %1644 = vmatprep.subr.mxu0 0.0
    %1645 = vmatpush1.msra.mxu0 %v1535
    %1646 = vmatprep.subr.mxu0 0.0
    %1647 = vmatpush1.msra.mxu0 %v1536
    %1648 = vmatprep.subr.mxu0 0.0
    %1649 = vmatpush1.msra.mxu0 %v1537
    %1650 = vmatprep.subr.mxu0 0.0
    %1651 = vmatpush1.msra.mxu0 %v1538
    %1652 = vmatprep.subr.mxu0 0.0
    %1653 = vmatpush1.msra.mxu0 %v1539
    %1654 = vmatprep.subr.mxu0 0.0
    %1655 = vmatpush1.msra.mxu0 %v1540
    %1656 = vmatprep.subr.mxu0 0.0
    %1657 = vmatpush1.msra.mxu0 %v1541
    %1658 = vmatprep.subr.mxu0 0.0
    %1659 = vmatpush1.msra.mxu0 %v1542
    %1660 = vmatprep.subr.mxu0 0.0
    %1661 = vmatpush1.msra.mxu0 %v1543
    %1662 = vmatprep.subr.mxu0 0.0
    %1663 = vmatpush1.msra.mxu0 %v1544
    %1664 = vmatprep.subr.mxu0 0.0
    %1665 = vmatpush1.msra.mxu0 %v1545
    %1666 = vmatprep.subr.mxu0 0.0
    %1667 = vmatpush1.msra.mxu0 %v1546
    %1668 = vmatprep.subr.mxu0 0.0
    %1669 = vmatpush1.msra.mxu0 %v1547
    %1670 = vmatprep.subr.mxu0 0.0
    %1671 = vmatpush1.msra.mxu0 %v1548
    %1672 = vmatprep.subr.mxu0 0.0
    %1673 = vmatpush1.msra.mxu0 %v1549
    %1674 = vmatprep.subr.mxu0 0.0
    %1675 = vmatpush1.msra.mxu0 %v1550
    %1676 = vmatprep.subr.mxu0 0.0
    %1677 = vmatpush1.msra.mxu0 %v1551
    %1678 = vmatprep.subr.mxu0 0.0
    %1679 = vmatpush1.msra.mxu0 %v1552
    %1680 = vmatprep.subr.mxu0 0.0
    %1681 = vmatpush1.msra.mxu0 %v1553
    %1682 = vmatprep.subr.mxu0 0.0
    %1683 = vmatpush1.msra.mxu0 %v1554
    %1684 = vmatprep.subr.mxu0 0.0
    %1685 = vmatpush1.msra.mxu0 %v1555
    %1686 = vmatprep.subr.mxu0 0.0
    %1687 = vmatpush1.msra.mxu0 %v1556
    %1688 = vmatprep.subr.mxu0 0.0
    %1689 = vmatpush1.msra.mxu0 %v1557
    %1690 = vmatprep.subr.mxu0 0.0
    %1691 = vmatpush1.msra.mxu0 %v1558
    %1692 = vmatprep.subr.mxu0 0.0
    %1693 = vmatpush1.msra.mxu0 %v1559
    %1694 = vmatprep.subr.mxu0 0.0
    %1695 = vmatpush1.msra.mxu0 %v1560
    %1696 = vmatprep.mubr.f32.mxu0 %v1078
    %1697 = vmatmul.mubr.f32.gmra.mrb[0].mxu0 %v1077
    %v1698 = vpop.f32.mrb[0].mxu0
    %v1699 = vadd.f32 %v1629, %v1698
    %v1700 = vpop.f32.mrb[0].mxu0
    %1701 = vdwg.mxu0
    %v1702 = vmax.f32 %v1699, 0.0
    %1703 = vst [vmem:[#allocation2] sm:$0xff] %v1481
    %1704 = vst [vmem:[#allocation4] sm:$0xff] %v1193
    %1705 = vst [vmem:[#allocation4 + $0x8] sm:$0xff] %v1194
    %1706 = vst [vmem:[#allocation6] sm:$0x1] %v1702
    // Predicated region
    $region66: #{graph_network_forward.1} parent=1 // pred_check
      _
    $region67: #{graph_network_forward.1} parent=1 // pred_check_branch
      %1708 = sbr.rel (0) target = $region69
    $region68: #{graph_network_forward.1} parent=1 // pred_region
      %s1710 = ssub.s32 128, 128
      %1711 = vsyncadd [#allocation3], %s1710
      %s1713 = sshll.u32 [#allocation2], 4
      %s1714 = int_to_ptr.vmem [resolvable:$true] %s1713
      %1716 = dma.vmem_to_hbm [thread:$0]  %s1714, 128, %s16, [#allocation3]
    $region69: #{graph_network_forward.1} parent=1 // pred_fallthru
      _
    // Predicated region
    $region70: #{graph_network_forward.1} parent=1 // pred_check
      _
    $region71: #{graph_network_forward.1} parent=1 // pred_check_branch
      %1718 = sbr.rel (0) target = $region73
    $region72: #{graph_network_forward.1} parent=1 // pred_region
      %s1720 = ssub.s32 256, 256
      %1721 = vsyncadd [#allocation5], %s1720
      %s1722 = sshll.u32 [#allocation4], 4
      %s1723 = int_to_ptr.vmem [resolvable:$true] %s1722
      %1728 = dma.vmem_to_hbm [thread:$0]  %s1723, 256, %s17, [#allocation5], 128, 128, 8
    $region73: #{graph_network_forward.1} parent=1 // pred_fallthru
      _
    // Predicated region
    $region74: #{graph_network_forward.1} parent=1 // pred_check
      _
    $region75: #{graph_network_forward.1} parent=1 // pred_check_branch
      %1730 = sbr.rel (0) target = $region77
    $region76: #{graph_network_forward.1} parent=1 // pred_region
      %s1732 = ssub.s32 16, 16
      %1733 = vsyncadd [#allocation5], %s1732
      %s1735 = sshll.u32 [#allocation6], 4
      %s1736 = int_to_ptr.vmem [resolvable:$true] %s1735
      %1738 = dma.vmem_to_hbm [thread:$0]  %s1736, 16, %s18, [#allocation5]
    $region77: #{graph_network_forward.1} parent=1 // pred_fallthru
      _
    // Predicated region
    $region78: #{graph_network_forward.1} parent=1 // pred_check
      _
    $region79: #{graph_network_forward.1} parent=1 // pred_check_branch
      %1740 = sbr.rel (0) target = $region81
    $region80: #{graph_network_forward.1} parent=1 // pred_region
      %1741 = dma.done [#allocation3], 128
    $region81: #{graph_network_forward.1} parent=1 // pred_fallthru
      _
    // Predicated region
    $region82: #{graph_network_forward.1} parent=1 // pred_check
      _
    $region83: #{graph_network_forward.1} parent=1 // pred_check_branch
      %1743 = sbr.rel (0) target = $region85
    $region84: #{graph_network_forward.1} parent=1 // pred_region
      %1744 = dma.done [#allocation5], 256
    $region85: #{graph_network_forward.1} parent=1 // pred_fallthru
      _
    // Predicated region
    $region86: #{graph_network_forward.1} parent=1 // pred_check
      _
    $region87: #{graph_network_forward.1} parent=1 // pred_check_branch
      %1746 = sbr.rel (0) target = $region89
    $region88: #{graph_network_forward.1} parent=1 // pred_region
      %1747 = dma.done [#allocation5], 16
    $region89: #{graph_network_forward.1} parent=1 // pred_fallthru
      _
    %1748 = vsyncpa [#allocation3], 1
    %1749 = vsyncpa [#allocation5], 1

</llo_original>
